<compile_context>
chip_gen: v6e
topology: v6e:2x2x1
jax: 0.10.0
libtpu: 0.0.40
codegen_flags: <defaults>
</compile_context>

<pallas_src>
import jax
import jax.numpy as jnp
from jax.experimental import pallas as pl
from jax.experimental.pallas import tpu as pltpu

H1, H2 = 500, 250              # logical hidden widths (match the PyTorch module)
H1P, H2P = 512, 256            # lane-padded hidden widths
BN_EPS = 1e-5
LEAKY_SLOPE = 0.01             # nn.LeakyReLU default negative_slope


def _leaky_relu(x):
    return jnp.where(x >= 0, x, LEAKY_SLOPE * x)


def _round_up(n, m):
    return ((n + m - 1) // m) * m


# ---------------------------------------------------------------------------
# Kernel: one batch tile -> fc1/fc2 on the MXU, fc3 as a VPU multiply + XLU
# lane-reduce, output compacted to a lane-dense (tm/128, 128) block.
# ---------------------------------------------------------------------------
def binary_classifier_kernel(x_ref, w1_ref, b1_ref, w2_ref, b2_ref, w3_ref, b3_ref, o_ref):
    # x arrives already cast to bf16 by the wrapper.
    x = x_ref[...]

    # fc1 (+ folded bn1) -> LeakyReLU   (dropout1 = identity at inference)
    h = jnp.dot(x, w1_ref[...], preferred_element_type=jnp.float32) + b1_ref[...]
    h = _leaky_relu(h)

    # fc2 (+ folded bn2) -> LeakyReLU   (dropout2 = identity at inference)
    h = jnp.dot(h.astype(jnp.bfloat16), w2_ref[...], preferred_element_type=jnp.float32) + b2_ref[...]
    h = _leaky_relu(h)

    # fc3 has a single output neuron: multiply by the w3 row vector (f32, VPU)
    # and lane-reduce (XLU).  The per-row logits are compacted 128-per-row so
    # the store is lane-dense and the sigmoid (EUP) touches only real logits.
    tm, k = h.shape
    g = tm // 128
    prod = h * w3_ref[...]                                             # (tm, H2P)
    logit = jnp.sum(prod.reshape(g, 128, k), axis=-1) + b3_ref[...]    # (g, 128)
    o_ref[...] = jax.nn.sigmoid(logit)


# ---------------------------------------------------------------------------
# Wrapper-side parameter prep: fold eval-mode BN, zero-pad to lane multiples,
# cast the MXU weights to bf16 (fc3 stays f32 on the VPU path).
# ---------------------------------------------------------------------------
def fold_and_pad_params(p):
    def pad2(a, rows, cols):
        out = jnp.zeros((rows, cols), a.dtype)
        return out.at[: a.shape[0], : a.shape[1]].set(a)

    s1 = p["g1"] * jax.lax.rsqrt(p["v1"] + BN_EPS)        # (1, H1)
    w1f = p["w1"] * s1                                    # scale fc1 output columns
    b1f = (p["b1"] - p["m1"]) * s1 + p["be1"]

    s2 = p["g2"] * jax.lax.rsqrt(p["v2"] + BN_EPS)        # (1, H2)
    w2f = p["w2"] * s2
    b2f = (p["b2"] - p["m2"]) * s2 + p["be2"]

    in_dim = p["w1"].shape[0]
    # Keep the feature dim lane-dense if it grows beyond one vreg width.
    in_dim_p = in_dim if in_dim <= 128 else _round_up(in_dim, 128)

    return dict(
        w1=pad2(w1f, in_dim_p, H1P).astype(jnp.bfloat16),
        b1=pad2(b1f, 1, H1P).astype(jnp.float32),
        w2=pad2(w2f, H1P, H2P).astype(jnp.bfloat16),
        b2=pad2(b2f, 1, H2P).astype(jnp.float32),
        w3=pad2(p["w3"].T, 1, H2P).astype(jnp.float32),               # (1, H2P) row, f32
        b3=jnp.full((1, 128), p["b3"][0, 0], jnp.float32),            # scalar on all lanes
    )


def binary_classifier_forward(x, folded, *, tm=2048):
    """x: (B, input_size) float32.  Returns sigmoid probs of shape (B, 1)."""
    B, in_dim = x.shape
    in_dim_p = folded["w1"].shape[0]

    # Rows are packed 128-per-lane-row in the compacted output -> pad B to 128.
    Bp = _round_up(B, 128)
    if Bp < 2048:
        # Single grid step: output block == full array, any 128-multiple of rows works.
        tm_eff = Bp
    else:
        # Multi-step: per-step output block is (tm/128, 128); keep tm a multiple
        # of 1024 (8-aligned sublanes) and guarantee >= 2 grid steps so v7x's
        # second TensorCore gets work on the "parallel" batch axis.
        cap = (Bp // 2) // 1024 * 1024
        tm_eff = max(1024, min((max(tm, 1024) // 1024) * 1024, cap))
        Bp = _round_up(Bp, tm_eff)

    # Pad batch/features and cast to bf16 on the wrapper side (halves x DMA).
    xp = jnp.zeros((Bp, in_dim_p), jnp.bfloat16).at[:B, :in_dim].set(x.astype(jnp.bfloat16))

    const2 = lambda i: (0, 0)   # weights/biases stay resident across grid steps
    out = pl.pallas_call(
        binary_classifier_kernel,
        out_shape=jax.ShapeDtypeStruct((Bp // 128, 128), jnp.float32),
        grid=(Bp // tm_eff,),
        in_specs=[
            pl.BlockSpec((tm_eff, in_dim_p), lambda i: (i, 0)),
            pl.BlockSpec(folded["w1"].shape, const2),
            pl.BlockSpec(folded["b1"].shape, const2),
            pl.BlockSpec(folded["w2"].shape, const2),
            pl.BlockSpec(folded["b2"].shape, const2),
            pl.BlockSpec(folded["w3"].shape, const2),
            pl.BlockSpec(folded["b3"].shape, const2),
        ],
        out_specs=pl.BlockSpec((tm_eff // 128, 128), lambda i: (i, 0)),
        compiler_params=pltpu.CompilerParams(
            dimension_semantics=("parallel",),
            vmem_limit_bytes=48 * 1024 * 1024,
        ),
    )(xp, folded["w1"], folded["b1"], folded["w2"], folded["b2"], folded["w3"], folded["b3"])

    # (Bp/128, 128) lane-dense slab -> (B, 1); row i lives at [i // 128, i % 128].
    return out.reshape(Bp, 1)[:B]


# ---------------------------------------------------------------------------
# Deterministic init mirroring the module's __init__ shapes, and f32 reference.
# ---------------------------------------------------------------------------
def init_params(key, input_size):
    ks = jax.random.split(key, 6)

    def linear(kw, kb, fan_in, fan_out):
        bound = 1.0 / jnp.sqrt(jnp.float32(fan_in))
        w = jax.random.uniform(kw, (fan_in, fan_out), jnp.float32, -bound, bound)
        b = jax.random.uniform(kb, (1, fan_out), jnp.float32, -bound, bound)
        return w, b

    w1, b1 = linear(ks[0], ks[1], input_size, H1)
    w2, b2 = linear(ks[2], ks[3], H1, H2)
    w3, b3 = linear(ks[4], ks[5], H2, 1)

    # BatchNorm1d defaults: gamma=1, beta=0, running_mean=0, running_var=1
    return dict(
        w1=w1, b1=b1,
        g1=jnp.ones((1, H1), jnp.float32), be1=jnp.zeros((1, H1), jnp.float32),
        m1=jnp.zeros((1, H1), jnp.float32), v1=jnp.ones((1, H1), jnp.float32),
        w2=w2, b2=b2,
        g2=jnp.ones((1, H2), jnp.float32), be2=jnp.zeros((1, H2), jnp.float32),
        m2=jnp.zeros((1, H2), jnp.float32), v2=jnp.ones((1, H2), jnp.float32),
        w3=w3, b3=b3,
    )


def _bn_eval(x, gamma, beta, mean, var):
    return (x - mean) * jax.lax.rsqrt(var + BN_EPS) * gamma + beta


def reference_forward(x, p):
    h = x @ p["w1"] + p["b1"]
    h = _leaky_relu(_bn_eval(h, p["g1"], p["be1"], p["m1"], p["v1"]))
    h = h @ p["w2"] + p["b2"]
    h = _leaky_relu(_bn_eval(h, p["g2"], p["be2"], p["m2"], p["v2"]))
    return jax.nn.sigmoid(h @ p["w3"] + p["b3"])


if __name__ == "__main__":
    key = jax.random.PRNGKey(0)
    k_x, k_p, k_x2, k_x3 = jax.random.split(key, 4)

    input_size = 32
    params = init_params(k_p, input_size)
    folded = fold_and_pad_params(params)

    # Small batch (single grid step; output block == full compacted array).
    x = jax.random.normal(k_x, (8, input_size), jnp.float32)
    out = jax.block_until_ready(binary_classifier_forward(x, folded))
    ref = reference_forward(x, params)
    assert out.shape == (8, 1), out.shape
    assert jnp.allclose(out, ref, atol=2e-2), float(jnp.max(jnp.abs(out - ref)))

    # Batch not a multiple of 128 (exercises row padding, multi-sublane output block).
    x2 = jax.random.normal(k_x2, (300, input_size), jnp.float32)
    out2 = jax.block_until_ready(binary_classifier_forward(x2, folded))
    ref2 = reference_forward(x2, params)
    assert out2.shape == (300, 1), out2.shape
    assert jnp.allclose(out2, ref2, atol=2e-2), float(jnp.max(jnp.abs(out2 - ref2)))

    # Multi-step grid path (>= 2 parallel steps, batch padded to the tile).
    x3 = jax.random.normal(k_x3, (2200, input_size), jnp.float32)
    out3 = jax.block_until_ready(binary_classifier_forward(x3, folded))
    ref3 = reference_forward(x3, params)
    assert out3.shape == (2200, 1), out3.shape
    assert jnp.allclose(out3, ref3, atol=2e-2), float(jnp.max(jnp.abs(out3 - ref3)))

    print("KERNEL_OK")
</pallas_src>

<mosaic_0001>
module attributes {stable_mosaic.version = 11 : i64} {
  func.func @binary_classifier_kernel(%arg0: i32, %arg1: memref<128x32xbf16, #tpu.memory_space<vmem>>, %arg2: memref<32x512xbf16, #tpu.memory_space<vmem>>, %arg3: memref<1x512xf32, #tpu.memory_space<vmem>>, %arg4: memref<512x256xbf16, #tpu.memory_space<vmem>>, %arg5: memref<1x256xf32, #tpu.memory_space<vmem>>, %arg6: memref<1x256xf32, #tpu.memory_space<vmem>>, %arg7: memref<1x128xf32, #tpu.memory_space<vmem>>, %arg8: memref<1x128xf32, #tpu.memory_space<vmem>>) attributes {dimension_semantics = [#tpu.dimension_semantics<parallel>], iteration_bounds = array<i64: 1>, scalar_prefetch = 0 : i64, scratch_operands = 0 : i64, tpu.core_type = #tpu.core_type<tc>, window_params = [{transform_indices = @transform_0, window_bounds = array<i64: 128, 32>}, {pipeline_mode = #tpu.pipeline_mode<synchronous>, transform_indices = @transform_1, window_bounds = array<i64: 32, 512>}, {pipeline_mode = #tpu.pipeline_mode<synchronous>, transform_indices = @transform_2, window_bounds = array<i64: 1, 512>}, {pipeline_mode = #tpu.pipeline_mode<synchronous>, transform_indices = @transform_3, window_bounds = array<i64: 512, 256>}, {pipeline_mode = #tpu.pipeline_mode<synchronous>, transform_indices = @transform_4, window_bounds = array<i64: 1, 256>}, {pipeline_mode = #tpu.pipeline_mode<synchronous>, transform_indices = @transform_5, window_bounds = array<i64: 1, 256>}, {pipeline_mode = #tpu.pipeline_mode<synchronous>, transform_indices = @transform_6, window_bounds = array<i64: 1, 128>}, {transform_indices = @transform_7, window_bounds = array<i64: 1, 128>}]} {
    %c0 = arith.constant 0 : index
    %c0_0 = arith.constant 0 : index
    %0 = vector.load %arg1[%c0, %c0_0] : memref<128x32xbf16, #tpu.memory_space<vmem>>, vector<128x32xbf16>
    %c0_1 = arith.constant 0 : index
    %c0_2 = arith.constant 0 : index
    %1 = vector.load %arg2[%c0_1, %c0_2] : memref<32x512xbf16, #tpu.memory_space<vmem>>, vector<32x512xbf16>
    %cst = arith.constant dense<0.000000e+00> : vector<128x512xf32>
    %2 = tpu.matmul %0, %1, %cst {dimension_numbers = #tpu.dot_dimension_numbers<[1], [0], [0], [1], [0, 0, 1, 1], [], []>} : vector<128x32xbf16>, vector<32x512xbf16>, vector<128x512xf32> -> vector<128x512xf32>
    %c0_3 = arith.constant 0 : index
    %c0_4 = arith.constant 0 : index
    %3 = vector.load %arg3[%c0_3, %c0_4] : memref<1x512xf32, #tpu.memory_space<vmem>>, vector<1x512xf32>
    %4 = vector.broadcast %3 : vector<1x512xf32> to vector<128x512xf32>
    %5 = arith.addf %2, %4 : vector<128x512xf32>
    %cst_5 = arith.constant 0.000000e+00 : f32
    %6 = vector.broadcast %cst_5 : f32 to vector<128x512xf32>
    %7 = arith.cmpf oge, %5, %6 : vector<128x512xf32>
    %cst_6 = arith.constant 0.00999999977 : f32
    %8 = vector.broadcast %cst_6 : f32 to vector<128x512xf32>
    %9 = arith.mulf %8, %5 : vector<128x512xf32>
    %10 = arith.select %7, %5, %9 : vector<128x512xi1>, vector<128x512xf32>
    %11 = arith.truncf %10 : vector<128x512xf32> to vector<128x512xbf16>
    %c0_7 = arith.constant 0 : index
    %c0_8 = arith.constant 0 : index
    %12 = vector.load %arg4[%c0_7, %c0_8] : memref<512x256xbf16, #tpu.memory_space<vmem>>, vector<512x256xbf16>
    %cst_9 = arith.constant dense<0.000000e+00> : vector<128x256xf32>
    %13 = tpu.matmul %11, %12, %cst_9 {dimension_numbers = #tpu.dot_dimension_numbers<[1], [0], [0], [1], [0, 0, 1, 1], [], []>} : vector<128x512xbf16>, vector<512x256xbf16>, vector<128x256xf32> -> vector<128x256xf32>
    %c0_10 = arith.constant 0 : index
    %c0_11 = arith.constant 0 : index
    %14 = vector.load %arg5[%c0_10, %c0_11] : memref<1x256xf32, #tpu.memory_space<vmem>>, vector<1x256xf32>
    %15 = vector.broadcast %14 : vector<1x256xf32> to vector<128x256xf32>
    %16 = arith.addf %13, %15 : vector<128x256xf32>
    %cst_12 = arith.constant 0.000000e+00 : f32
    %17 = vector.broadcast %cst_12 : f32 to vector<128x256xf32>
    %18 = arith.cmpf oge, %16, %17 : vector<128x256xf32>
    %cst_13 = arith.constant 0.00999999977 : f32
    %19 = vector.broadcast %cst_13 : f32 to vector<128x256xf32>
    %20 = arith.mulf %19, %16 : vector<128x256xf32>
    %21 = arith.select %18, %16, %20 : vector<128x256xi1>, vector<128x256xf32>
    %c0_14 = arith.constant 0 : index
    %c0_15 = arith.constant 0 : index
    %22 = vector.load %arg6[%c0_14, %c0_15] : memref<1x256xf32, #tpu.memory_space<vmem>>, vector<1x256xf32>
    %23 = vector.broadcast %22 : vector<1x256xf32> to vector<128x256xf32>
    %24 = arith.mulf %21, %23 : vector<128x256xf32>
    %25 = vector.shape_cast %24 : vector<128x256xf32> to vector<1x128x256xf32>
    %cst_16 = arith.constant dense<0.000000e+00> : vector<1x128xf32>
    %26 = vector.multi_reduction <add>, %25, %cst_16 [2] : vector<1x128x256xf32> to vector<1x128xf32>
    %c0_17 = arith.constant 0 : index
    %c0_18 = arith.constant 0 : index
    %27 = vector.load %arg7[%c0_17, %c0_18] : memref<1x128xf32, #tpu.memory_space<vmem>>, vector<1x128xf32>
    %28 = arith.addf %26, %27 : vector<1x128xf32>
    %29 = arith.negf %28 : vector<1x128xf32>
    %30 = math.exp %29 : vector<1x128xf32>
    %cst_19 = arith.constant 1.000000e+00 : f32
    %31 = vector.broadcast %cst_19 : f32 to vector<1x128xf32>
    %32 = arith.addf %31, %30 : vector<1x128xf32>
    %33 = arith.divf %31, %32 : vector<1x128xf32>
    %c0_20 = arith.constant 0 : index
    %c0_21 = arith.constant 0 : index
    %34 = vector.load %arg8[%c0_20, %c0_21] : memref<1x128xf32, #tpu.memory_space<vmem>>, vector<1x128xf32>
    tpu.vector_store %arg8[%c0_20, %c0_21], %33 {strides = array<i32>} : memref<1x128xf32, #tpu.memory_space<vmem>>, vector<1x128xf32>,
    return
  }
  func.func @transform_0(%arg0: i32) -> (i32, i32) {
    %c0_i32 = arith.constant 0 : i32
    %c0_i32_0 = arith.constant 0 : i32
    return %arg0, %c0_i32 : i32, i32
  }
  func.func @transform_1(%arg0: i32) -> (i32, i32) {
    %c0_i32 = arith.constant 0 : i32
    %c0_i32_0 = arith.constant 0 : i32
    %c0_i32_1 = arith.constant 0 : i32
    return %c0_i32, %c0_i32_0 : i32, i32
  }
  func.func @transform_2(%arg0: i32) -> (i32, i32) {
    %c0_i32 = arith.constant 0 : i32
    %c0_i32_0 = arith.constant 0 : i32
    %c0_i32_1 = arith.constant 0 : i32
    return %c0_i32, %c0_i32_0 : i32, i32
  }
  func.func @transform_3(%arg0: i32) -> (i32, i32) {
    %c0_i32 = arith.constant 0 : i32
    %c0_i32_0 = arith.constant 0 : i32
    %c0_i32_1 = arith.constant 0 : i32
    return %c0_i32, %c0_i32_0 : i32, i32
  }
  func.func @transform_4(%arg0: i32) -> (i32, i32) {
    %c0_i32 = arith.constant 0 : i32
    %c0_i32_0 = arith.constant 0 : i32
    %c0_i32_1 = arith.constant 0 : i32
    return %c0_i32, %c0_i32_0 : i32, i32
  }
  func.func @transform_5(%arg0: i32) -> (i32, i32) {
    %c0_i32 = arith.constant 0 : i32
    %c0_i32_0 = arith.constant 0 : i32
    %c0_i32_1 = arith.constant 0 : i32
    return %c0_i32, %c0_i32_0 : i32, i32
  }
  func.func @transform_6(%arg0: i32) -> (i32, i32) {
    %c0_i32 = arith.constant 0 : i32
    %c0_i32_0 = arith.constant 0 : i32
    %c0_i32_1 = arith.constant 0 : i32
    return %c0_i32, %c0_i32_0 : i32, i32
  }
  func.func @transform_7(%arg0: i32) -> (i32, i32) {
    %c0_i32 = arith.constant 0 : i32
    %c0_i32_0 = arith.constant 0 : i32
    return %arg0, %c0_i32 : i32, i32
  }
}

</mosaic_0001>

<llo_original>
// kernel: tpu_custom_call.1
$region0: #{tpu_custom_call.1}
  #allocation0 [shape = 'u32[]', space=smem, size = 0x4, offset = 0x4, fixed_abs, tag = 'smem constant byte address 0x4 - core index']
  #allocation1 [shape = 'u32[144,128]{1,0:T(1,128)}', space=vmem, size = 0x12000, scoped, tag = 'internal scratch']
  %s0 = inlined_call_operand.vmem [shape: bf16[128,32], index: 0, kind: input, shape index: {}]
  %s1 = inlined_call_operand.vmem [shape: bf16[32,512], index: 1, kind: input, shape index: {}]
  %s2 = inlined_call_operand.vmem [shape: f32[1,512], index: 2, kind: input, shape index: {}]
  %s3 = inlined_call_operand.hbm [shape: bf16[512,256], index: 3, kind: input, shape index: {}]
  %s4 = inlined_call_operand.vmem [shape: f32[1,256], index: 4, kind: input, shape index: {}]
  %s5 = inlined_call_operand.vmem [shape: f32[1,256], index: 5, kind: input, shape index: {}]
  %s6 = inlined_call_operand.vmem [shape: f32[1,128], index: 6, kind: input, shape index: {}]
  %s7 = inlined_call_operand.hbm [shape: f32[1,128], index: 7, kind: output, shape index: {}]
  %s8 = sld [smem:[#allocation0]]
  $region42: #{tpu_custom_call.1} parent=0
    _
  %s10 = ssub.s32 1, %s8
  %s11 = scalar_select 0, %s10, %s8
  $region1: #{tpu_custom_call.1} parent=0
    #allocation2 [shape = 'u8[262144]{0}', space=vmem, size = 0x40000, scoped, tag = 'input window, operand 3, single buffered']
    #allocation3 [shape = 's32[1]{0}', space=sflag, size = 0x4, scoped, tag = 'scoped memory for tpu_custom_call.1']
    #allocation4 [shape = 's32[1]{0}', space=sflag, size = 0x4, scoped, tag = 'scoped memory for tpu_custom_call.1']
    #allocation5 [shape = 'u8[512]{0}', space=vmem, size = 0x400, scoped, tag = 'output window, operand 0, single buffered']
    %12 = vsyncpa [#allocation3], 0
    %13 = vsyncpa [#allocation4], 0
    // Predicated region
    $region2: #{tpu_custom_call.1} parent=1 // pred_check
      _
    $region3: #{tpu_custom_call.1} parent=1 // pred_check_branch
      %15 = sbr.rel (0) target = $region5
    $region4: #{tpu_custom_call.1} parent=1 // pred_region
      _
    $region5: #{tpu_custom_call.1} parent=1 // pred_fallthru
      _
    // Predicated region
    $region6: #{tpu_custom_call.1} parent=1 // pred_check
      _
    $region7: #{tpu_custom_call.1} parent=1 // pred_check_branch
      %17 = sbr.rel (0) target = $region9
    $region8: #{tpu_custom_call.1} parent=1 // pred_region
      _
    $region9: #{tpu_custom_call.1} parent=1 // pred_fallthru
      _
    // Predicated region
    $region10: #{tpu_custom_call.1} parent=1 // pred_check
      _
    $region11: #{tpu_custom_call.1} parent=1 // pred_check_branch
      %19 = sbr.rel (0) target = $region13
    $region12: #{tpu_custom_call.1} parent=1 // pred_region
      _
    $region13: #{tpu_custom_call.1} parent=1 // pred_fallthru
      _
    // Predicated region
    $region14: #{tpu_custom_call.1} parent=1 // pred_check
      _
    $region15: #{tpu_custom_call.1} parent=1 // pred_check_branch
      %21 = sbr.rel (0) target = $region17
    $region16: #{tpu_custom_call.1} parent=1 // pred_region
      %s23 = ssub.s32 8192, 8192
      %24 = vsyncadd [#allocation3], %s23
      %s25 = sshll.u32 [#allocation2], 4
      %s26 = int_to_ptr.vmem [resolvable:$true] %s25
      %31 = dma.hbm_to_vmem [thread:$0]  %s3, 8192, %s26, [#allocation3], 128, 128, 8
    $region17: #{tpu_custom_call.1} parent=1 // pred_fallthru
      _
    // Predicated region
    $region18: #{tpu_custom_call.1} parent=1 // pred_check
      _
    $region19: #{tpu_custom_call.1} parent=1 // pred_check_branch
      %33 = sbr.rel (0) target = $region21
    $region20: #{tpu_custom_call.1} parent=1 // pred_region
      _
    $region21: #{tpu_custom_call.1} parent=1 // pred_fallthru
      _
    // Predicated region
    $region22: #{tpu_custom_call.1} parent=1 // pred_check
      _
    $region23: #{tpu_custom_call.1} parent=1 // pred_check_branch
      %35 = sbr.rel (0) target = $region25
    $region24: #{tpu_custom_call.1} parent=1 // pred_region
      _
    $region25: #{tpu_custom_call.1} parent=1 // pred_fallthru
      _
    // Predicated region
    $region26: #{tpu_custom_call.1} parent=1 // pred_check
      _
    $region27: #{tpu_custom_call.1} parent=1 // pred_check_branch
      %37 = sbr.rel (0) target = $region29
    $region28: #{tpu_custom_call.1} parent=1 // pred_region
      _
    $region29: #{tpu_custom_call.1} parent=1 // pred_fallthru
      _
    // Predicated region
    $region30: #{tpu_custom_call.1} parent=1 // pred_check
      _
    $region31: #{tpu_custom_call.1} parent=1 // pred_check_branch
      %39 = sbr.rel (0) target = $region33
    $region32: #{tpu_custom_call.1} parent=1 // pred_region
      %40 = dma.done [#allocation3], 8192
    $region33: #{tpu_custom_call.1} parent=1 // pred_fallthru
      _
    %v42 = vld [vmem:[%s0] sm:$0xf]
    %v43 = vld [vmem:[%s0 + $0x4] sm:$0xf]
    %v44 = vld [vmem:[%s0 + $0x8] sm:$0xf]
    %v45 = vld [vmem:[%s0 + $0xc] sm:$0xf]
    %v46 = vld [vmem:[%s0 + $0x10] sm:$0xf]
    %v47 = vld [vmem:[%s0 + $0x14] sm:$0xf]
    %v48 = vld [vmem:[%s0 + $0x18] sm:$0xf]
    %v49 = vld [vmem:[%s0 + $0x1c] sm:$0xf]
    %v50 = vld [vmem:[%s0 + $0x20] sm:$0xf]
    %v51 = vld [vmem:[%s0 + $0x24] sm:$0xf]
    %v52 = vld [vmem:[%s0 + $0x28] sm:$0xf]
    %v53 = vld [vmem:[%s0 + $0x2c] sm:$0xf]
    %v54 = vld [vmem:[%s0 + $0x30] sm:$0xf]
    %v55 = vld [vmem:[%s0 + $0x34] sm:$0xf]
    %v56 = vld [vmem:[%s0 + $0x38] sm:$0xf]
    %v57 = vld [vmem:[%s0 + $0x3c] sm:$0xf]
    %v58 = vld [vmem:[%s1] sm:$0xff]
    %v59 = vld [vmem:[%s1 + $0x8] sm:$0xff]
    %v60 = vld [vmem:[%s1 + $0x10] sm:$0xff]
    %v61 = vld [vmem:[%s1 + $0x18] sm:$0xff]
    %v62 = vld [vmem:[%s1 + $0x20] sm:$0xff]
    %v63 = vld [vmem:[%s1 + $0x28] sm:$0xff]
    %v64 = vld [vmem:[%s1 + $0x30] sm:$0xff]
    %v65 = vld [vmem:[%s1 + $0x38] sm:$0xff]
    %v66 = vld [vmem:[%s2] sm:$0xf]
    %v68 = vlaneseq
    %v69 = vshrl.u32 %v68, 7
    %v70 = vsub.s32 0, %v69
    %v71 = vrot.slane %v66, %v70
    %v72 = vlaneseq
    %v73 = vshrl.u32 %v72, 7
    %v74 = vsub.s32 1, %v73
    %v75 = vrot.slane %v66, %v74
    %v76 = vlaneseq
    %v77 = vshrl.u32 %v76, 7
    %v78 = vsub.s32 2, %v77
    %v79 = vrot.slane %v66, %v78
    %v80 = vlaneseq
    %v81 = vshrl.u32 %v80, 7
    %v82 = vsub.s32 3, %v81
    %v83 = vrot.slane %v66, %v82
    %v104 = vunpack.c.l.b16 %v42
    %v105 = vunpack.c.l.b16 %v43
    %v106 = vunpack.c.l.b16 %v44
    %v107 = vunpack.c.l.b16 %v45
    %v108 = vunpack.c.l.b16 %v46
    %v109 = vunpack.c.l.b16 %v47
    %v110 = vunpack.c.l.b16 %v48
    %v111 = vunpack.c.l.b16 %v49
    %v112 = vunpack.c.l.b16 %v50
    %v113 = vunpack.c.l.b16 %v51
    %v114 = vunpack.c.l.b16 %v52
    %v115 = vunpack.c.l.b16 %v53
    %v116 = vunpack.c.l.b16 %v54
    %v117 = vunpack.c.l.b16 %v55
    %v118 = vunpack.c.l.b16 %v56
    %v119 = vunpack.c.l.b16 %v57
    %v120 = vpack.c.b16 %v105, %v104
    %v121 = vpack.c.b16 %v107, %v106
    %v122 = vpack.c.b16 %v109, %v108
    %v123 = vpack.c.b16 %v111, %v110
    %v124 = vpack.c.b16 %v113, %v112
    %v125 = vpack.c.b16 %v115, %v114
    %v126 = vpack.c.b16 %v117, %v116
    %v127 = vpack.c.b16 %v119, %v118
    %v136 = vunpack.c.l.b16 %v58
    %v137 = vunpack.c.h.b16 %v58
    %v138 = vunpack.c.l.b16 %v59
    %v139 = vunpack.c.h.b16 %v59
    %v140 = vunpack.c.l.b16 %v60
    %v141 = vunpack.c.h.b16 %v60
    %v142 = vunpack.c.l.b16 %v61
    %v143 = vunpack.c.h.b16 %v61
    %v144 = vunpack.c.l.b16 %v62
    %v145 = vunpack.c.h.b16 %v62
    %v146 = vunpack.c.l.b16 %v63
    %v147 = vunpack.c.h.b16 %v63
    %v148 = vunpack.c.l.b16 %v64
    %v149 = vunpack.c.h.b16 %v64
    %v150 = vunpack.c.l.b16 %v65
    %v151 = vunpack.c.h.b16 %v65
    %v152 = vpack.c.b16 %v140, %v136
    %v153 = vpack.c.b16 %v141, %v137
    %v154 = vpack.c.b16 %v142, %v138
    %v155 = vpack.c.b16 %v143, %v139
    %v156 = vpack.c.b16 %v148, %v144
    %v157 = vpack.c.b16 %v149, %v145
    %v158 = vpack.c.b16 %v150, %v146
    %v159 = vpack.c.b16 %v151, %v147
    %vm168 = vcmask 261120
    %v170 = vsel %vm168, %v120, 0
    %v173 = vsel %vm168, %v121, 0
    %v176 = vsel %vm168, %v122, 0
    %v179 = vsel %vm168, %v123, 0
    %v182 = vsel %vm168, %v124, 0
    %v185 = vsel %vm168, %v125, 0
    %v188 = vsel %vm168, %v126, 0
    %v191 = vsel %vm168, %v127, 0
    %193 = vmatprep.subr.bf16.mxu0 0
    %194 = vmatpush1.bf16.msra.mxu0 0
    %195 = vmatprep.subr.bf16.mxu0 0
    %196 = vmatpush1.bf16.msra.mxu0 0
    %197 = vmatprep.subr.bf16.mxu0 0
    %198 = vmatpush1.bf16.msra.mxu0 0
    %199 = vmatprep.subr.bf16.mxu0 0
    %200 = vmatpush1.bf16.msra.mxu0 0
    %201 = vmatprep.subr.bf16.mxu0 0
    %202 = vmatpush1.bf16.msra.mxu0 0
    %203 = vmatprep.subr.bf16.mxu0 0
    %204 = vmatpush1.bf16.msra.mxu0 0
    %205 = vmatprep.subr.bf16.mxu0 %v157
    %206 = vmatpush1.bf16.msra.mxu0 %v156
    %207 = vmatprep.subr.bf16.mxu0 %v153
    %208 = vmatpush1.bf16.msra.mxu0 %v152
    %209 = vmatprep.subr.bf16.mxu0 0
    %210 = vmatpush2.bf16.msra.mxu0 0
    %211 = vmatprep.subr.bf16.mxu0 0
    %212 = vmatpush2.bf16.msra.mxu0 0
    %213 = vmatprep.subr.bf16.mxu0 0
    %214 = vmatpush2.bf16.msra.mxu0 0
    %215 = vmatprep.subr.bf16.mxu0 0
    %216 = vmatpush2.bf16.msra.mxu0 0
    %217 = vmatprep.subr.bf16.mxu0 0
    %218 = vmatpush2.bf16.msra.mxu0 0
    %219 = vmatprep.subr.bf16.mxu0 0
    %220 = vmatpush2.bf16.msra.mxu0 0
    %221 = vmatprep.subr.bf16.mxu0 0
    %222 = vmatpush2.bf16.msra.mxu0 0
    %223 = vmatprep.subr.bf16.mxu0 0
    %224 = vmatpush2.bf16.msra.mxu0 0
    %225 = vmatprep.mubr.bf16.mxu0 0
    %226 = vmatmul.mubr.bf16.gmra.mxu0 %v170
    %v227 = vpop.f32.mrf.mxu0
    %v228 = vadd.f32 %v71, %v227
    %v229 = vpop.f32.mrf.mxu0
    %v230 = vadd.f32 %v75, %v229
    %v231 = vpop.f32.mrf.mxu0
    %v232 = vadd.f32 %v71, %v231
    %v233 = vpop.f32.mrf.mxu0
    %v234 = vadd.f32 %v75, %v233
    %235 = vmatprep.mubr.bf16.mxu0 0
    %236 = vmatmul.mubr.bf16.gmra.mxu0 %v173
    %v237 = vpop.f32.mrf.mxu0
    %v238 = vadd.f32 %v71, %v237
    %v239 = vpop.f32.mrf.mxu0
    %v240 = vadd.f32 %v75, %v239
    %v241 = vpop.f32.mrf.mxu0
    %v242 = vadd.f32 %v71, %v241
    %v243 = vpop.f32.mrf.mxu0
    %v244 = vadd.f32 %v75, %v243
    %245 = vmatprep.mubr.bf16.mxu0 0
    %246 = vmatmul.mubr.bf16.gmra.mxu0 %v176
    %v247 = vpop.f32.mrf.mxu0
    %v248 = vadd.f32 %v71, %v247
    %v249 = vpop.f32.mrf.mxu0
    %v250 = vadd.f32 %v75, %v249
    %v251 = vpop.f32.mrf.mxu0
    %v252 = vadd.f32 %v71, %v251
    %v253 = vpop.f32.mrf.mxu0
    %v254 = vadd.f32 %v75, %v253
    %255 = vmatprep.mubr.bf16.mxu0 0
    %256 = vmatmul.mubr.bf16.gmra.mxu0 %v179
    %v257 = vpop.f32.mrf.mxu0
    %v258 = vadd.f32 %v71, %v257
    %v259 = vpop.f32.mrf.mxu0
    %v260 = vadd.f32 %v75, %v259
    %v261 = vpop.f32.mrf.mxu0
    %v262 = vadd.f32 %v71, %v261
    %v263 = vpop.f32.mrf.mxu0
    %v264 = vadd.f32 %v75, %v263
    %265 = vmatprep.mubr.bf16.mxu0 0
    %266 = vmatmul.mubr.bf16.gmra.mxu0 %v182
    %v267 = vpop.f32.mrf.mxu0
    %v268 = vadd.f32 %v71, %v267
    %v269 = vpop.f32.mrf.mxu0
    %v270 = vadd.f32 %v75, %v269
    %v271 = vpop.f32.mrf.mxu0
    %v272 = vadd.f32 %v71, %v271
    %v273 = vpop.f32.mrf.mxu0
    %v274 = vadd.f32 %v75, %v273
    %275 = vmatprep.mubr.bf16.mxu0 0
    %276 = vmatmul.mubr.bf16.gmra.mxu0 %v185
    %v277 = vpop.f32.mrf.mxu0
    %v278 = vadd.f32 %v71, %v277
    %v279 = vpop.f32.mrf.mxu0
    %v280 = vadd.f32 %v75, %v279
    %v281 = vpop.f32.mrf.mxu0
    %v282 = vadd.f32 %v71, %v281
    %v283 = vpop.f32.mrf.mxu0
    %v284 = vadd.f32 %v75, %v283
    %285 = vmatprep.mubr.bf16.mxu0 0
    %286 = vmatmul.mubr.bf16.gmra.mxu0 %v188
    %v287 = vpop.f32.mrf.mxu0
    %v288 = vadd.f32 %v71, %v287
    %v289 = vpop.f32.mrf.mxu0
    %v290 = vadd.f32 %v75, %v289
    %v291 = vpop.f32.mrf.mxu0
    %v292 = vadd.f32 %v71, %v291
    %v293 = vpop.f32.mrf.mxu0
    %v294 = vadd.f32 %v75, %v293
    %295 = vmatprep.mubr.bf16.mxu0 0
    %296 = vmatmul.mubr.bf16.gmra.mxu0 %v191
    %v297 = vpop.f32.mrf.mxu0
    %v298 = vadd.f32 %v71, %v297
    %v299 = vpop.f32.mrf.mxu0
    %v300 = vadd.f32 %v75, %v299
    %v301 = vpop.f32.mrf.mxu0
    %v302 = vadd.f32 %v71, %v301
    %v303 = vpop.f32.mrf.mxu0
    %v304 = vadd.f32 %v75, %v303
    %305 = vdwg.mxu0
    %306 = vmatprep.subr.bf16.mxu0 0
    %307 = vmatpush1.bf16.msra.mxu0 0
    %308 = vmatprep.subr.bf16.mxu0 0
    %309 = vmatpush1.bf16.msra.mxu0 0
    %310 = vmatprep.subr.bf16.mxu0 0
    %311 = vmatpush1.bf16.msra.mxu0 0
    %312 = vmatprep.subr.bf16.mxu0 0
    %313 = vmatpush1.bf16.msra.mxu0 0
    %314 = vmatprep.subr.bf16.mxu0 0
    %315 = vmatpush1.bf16.msra.mxu0 0
    %316 = vmatprep.subr.bf16.mxu0 0
    %317 = vmatpush1.bf16.msra.mxu0 0
    %318 = vmatprep.subr.bf16.mxu0 %v159
    %319 = vmatpush1.bf16.msra.mxu0 %v158
    %320 = vmatprep.subr.bf16.mxu0 %v155
    %321 = vmatpush1.bf16.msra.mxu0 %v154
    %322 = vmatprep.subr.bf16.mxu0 0
    %323 = vmatpush2.bf16.msra.mxu0 0
    %324 = vmatprep.subr.bf16.mxu0 0
    %325 = vmatpush2.bf16.msra.mxu0 0
    %326 = vmatprep.subr.bf16.mxu0 0
    %327 = vmatpush2.bf16.msra.mxu0 0
    %328 = vmatprep.subr.bf16.mxu0 0
    %329 = vmatpush2.bf16.msra.mxu0 0
    %330 = vmatprep.subr.bf16.mxu0 0
    %331 = vmatpush2.bf16.msra.mxu0 0
    %332 = vmatprep.subr.bf16.mxu0 0
    %333 = vmatpush2.bf16.msra.mxu0 0
    %334 = vmatprep.subr.bf16.mxu0 0
    %335 = vmatpush2.bf16.msra.mxu0 0
    %336 = vmatprep.subr.bf16.mxu0 0
    %337 = vmatpush2.bf16.msra.mxu0 0
    %338 = vmatprep.mubr.bf16.mxu0 0
    %339 = vmatmul.mubr.bf16.gmra.mxu0 %v170
    %v340 = vpop.f32.mrf.mxu0
    %v341 = vadd.f32 %v79, %v340
    %v342 = vpop.f32.mrf.mxu0
    %v343 = vadd.f32 %v83, %v342
    %v344 = vpop.f32.mrf.mxu0
    %v345 = vadd.f32 %v79, %v344
    %v346 = vpop.f32.mrf.mxu0
    %v347 = vadd.f32 %v83, %v346
    %348 = vmatprep.mubr.bf16.mxu0 0
    %349 = vmatmul.mubr.bf16.gmra.mxu0 %v173
    %v350 = vpop.f32.mrf.mxu0
    %v351 = vadd.f32 %v79, %v350
    %v352 = vpop.f32.mrf.mxu0
    %v353 = vadd.f32 %v83, %v352
    %v354 = vpop.f32.mrf.mxu0
    %v355 = vadd.f32 %v79, %v354
    %v356 = vpop.f32.mrf.mxu0
    %v357 = vadd.f32 %v83, %v356
    %358 = vmatprep.mubr.bf16.mxu0 0
    %359 = vmatmul.mubr.bf16.gmra.mxu0 %v176
    %v360 = vpop.f32.mrf.mxu0
    %v361 = vadd.f32 %v79, %v360
    %v362 = vpop.f32.mrf.mxu0
    %v363 = vadd.f32 %v83, %v362
    %v364 = vpop.f32.mrf.mxu0
    %v365 = vadd.f32 %v79, %v364
    %v366 = vpop.f32.mrf.mxu0
    %v367 = vadd.f32 %v83, %v366
    %368 = vmatprep.mubr.bf16.mxu0 0
    %369 = vmatmul.mubr.bf16.gmra.mxu0 %v179
    %v370 = vpop.f32.mrf.mxu0
    %v371 = vadd.f32 %v79, %v370
    %v372 = vpop.f32.mrf.mxu0
    %v373 = vadd.f32 %v83, %v372
    %v374 = vpop.f32.mrf.mxu0
    %v375 = vadd.f32 %v79, %v374
    %v376 = vpop.f32.mrf.mxu0
    %v377 = vadd.f32 %v83, %v376
    %378 = vmatprep.mubr.bf16.mxu0 0
    %379 = vmatmul.mubr.bf16.gmra.mxu0 %v182
    %v380 = vpop.f32.mrf.mxu0
    %v381 = vadd.f32 %v79, %v380
    %v382 = vpop.f32.mrf.mxu0
    %v383 = vadd.f32 %v83, %v382
    %v384 = vpop.f32.mrf.mxu0
    %v385 = vadd.f32 %v79, %v384
    %v386 = vpop.f32.mrf.mxu0
    %v387 = vadd.f32 %v83, %v386
    %388 = vmatprep.mubr.bf16.mxu0 0
    %389 = vmatmul.mubr.bf16.gmra.mxu0 %v185
    %v390 = vpop.f32.mrf.mxu0
    %v391 = vadd.f32 %v79, %v390
    %v392 = vpop.f32.mrf.mxu0
    %v393 = vadd.f32 %v83, %v392
    %v394 = vpop.f32.mrf.mxu0
    %v395 = vadd.f32 %v79, %v394
    %v396 = vpop.f32.mrf.mxu0
    %v397 = vadd.f32 %v83, %v396
    %398 = vmatprep.mubr.bf16.mxu0 0
    %399 = vmatmul.mubr.bf16.gmra.mxu0 %v188
    %v400 = vpop.f32.mrf.mxu0
    %v401 = vadd.f32 %v79, %v400
    %v402 = vpop.f32.mrf.mxu0
    %v403 = vadd.f32 %v83, %v402
    %v404 = vpop.f32.mrf.mxu0
    %v405 = vadd.f32 %v79, %v404
    %v406 = vpop.f32.mrf.mxu0
    %v407 = vadd.f32 %v83, %v406
    %408 = vmatprep.mubr.bf16.mxu0 0
    %409 = vmatmul.mubr.bf16.gmra.mxu0 %v191
    %v410 = vpop.f32.mrf.mxu0
    %v411 = vadd.f32 %v79, %v410
    %v412 = vpop.f32.mrf.mxu0
    %v413 = vadd.f32 %v83, %v412
    %v414 = vpop.f32.mrf.mxu0
    %v415 = vadd.f32 %v79, %v414
    %v416 = vpop.f32.mrf.mxu0
    %v417 = vadd.f32 %v83, %v416
    %418 = vdwg.mxu0
    %vm419 = vcmp.ge.f32.partialorder %v228, 0.0
    %vm420 = vcmp.ge.f32.partialorder %v230, 0.0
    %vm421 = vcmp.ge.f32.partialorder %v341, 0.0
    %vm422 = vcmp.ge.f32.partialorder %v343, 0.0
    %vm423 = vcmp.ge.f32.partialorder %v232, 0.0
    %vm424 = vcmp.ge.f32.partialorder %v234, 0.0
    %vm425 = vcmp.ge.f32.partialorder %v345, 0.0
    %vm426 = vcmp.ge.f32.partialorder %v347, 0.0
    %vm427 = vcmp.ge.f32.partialorder %v238, 0.0
    %vm428 = vcmp.ge.f32.partialorder %v240, 0.0
    %vm429 = vcmp.ge.f32.partialorder %v351, 0.0
    %vm430 = vcmp.ge.f32.partialorder %v353, 0.0
    %vm431 = vcmp.ge.f32.partialorder %v242, 0.0
    %vm432 = vcmp.ge.f32.partialorder %v244, 0.0
    %vm433 = vcmp.ge.f32.partialorder %v355, 0.0
    %vm434 = vcmp.ge.f32.partialorder %v357, 0.0
    %vm435 = vcmp.ge.f32.partialorder %v248, 0.0
    %vm436 = vcmp.ge.f32.partialorder %v250, 0.0
    %vm437 = vcmp.ge.f32.partialorder %v361, 0.0
    %vm438 = vcmp.ge.f32.partialorder %v363, 0.0
    %vm439 = vcmp.ge.f32.partialorder %v252, 0.0
    %vm440 = vcmp.ge.f32.partialorder %v254, 0.0
    %vm441 = vcmp.ge.f32.partialorder %v365, 0.0
    %vm442 = vcmp.ge.f32.partialorder %v367, 0.0
    %vm443 = vcmp.ge.f32.partialorder %v258, 0.0
    %vm444 = vcmp.ge.f32.partialorder %v260, 0.0
    %vm445 = vcmp.ge.f32.partialorder %v371, 0.0
    %vm446 = vcmp.ge.f32.partialorder %v373, 0.0
    %vm447 = vcmp.ge.f32.partialorder %v262, 0.0
    %vm448 = vcmp.ge.f32.partialorder %v264, 0.0
    %vm449 = vcmp.ge.f32.partialorder %v375, 0.0
    %vm450 = vcmp.ge.f32.partialorder %v377, 0.0
    %vm451 = vcmp.ge.f32.partialorder %v268, 0.0
    %vm452 = vcmp.ge.f32.partialorder %v270, 0.0
    %vm453 = vcmp.ge.f32.partialorder %v381, 0.0
    %vm454 = vcmp.ge.f32.partialorder %v383, 0.0
    %vm455 = vcmp.ge.f32.partialorder %v272, 0.0
    %vm456 = vcmp.ge.f32.partialorder %v274, 0.0
    %vm457 = vcmp.ge.f32.partialorder %v385, 0.0
    %vm458 = vcmp.ge.f32.partialorder %v387, 0.0
    %vm459 = vcmp.ge.f32.partialorder %v278, 0.0
    %vm460 = vcmp.ge.f32.partialorder %v280, 0.0
    %vm461 = vcmp.ge.f32.partialorder %v391, 0.0
    %vm462 = vcmp.ge.f32.partialorder %v393, 0.0
    %vm463 = vcmp.ge.f32.partialorder %v282, 0.0
    %vm464 = vcmp.ge.f32.partialorder %v284, 0.0
    %vm465 = vcmp.ge.f32.partialorder %v395, 0.0
    %vm466 = vcmp.ge.f32.partialorder %v397, 0.0
    %vm467 = vcmp.ge.f32.partialorder %v288, 0.0
    %vm468 = vcmp.ge.f32.partialorder %v290, 0.0
    %vm469 = vcmp.ge.f32.partialorder %v401, 0.0
    %vm470 = vcmp.ge.f32.partialorder %v403, 0.0
    %vm471 = vcmp.ge.f32.partialorder %v292, 0.0
    %vm472 = vcmp.ge.f32.partialorder %v294, 0.0
    %vm473 = vcmp.ge.f32.partialorder %v405, 0.0
    %vm474 = vcmp.ge.f32.partialorder %v407, 0.0
    %vm475 = vcmp.ge.f32.partialorder %v298, 0.0
    %vm476 = vcmp.ge.f32.partialorder %v300, 0.0
    %vm477 = vcmp.ge.f32.partialorder %v411, 0.0
    %vm478 = vcmp.ge.f32.partialorder %v413, 0.0
    %vm479 = vcmp.ge.f32.partialorder %v302, 0.0
    %vm480 = vcmp.ge.f32.partialorder %v304, 0.0
    %vm481 = vcmp.ge.f32.partialorder %v415, 0.0
    %vm482 = vcmp.ge.f32.partialorder %v417, 0.0
    %v483 = vmul.f32 %v228, 0.01
    %v484 = vmul.f32 %v230, 0.01
    %v485 = vmul.f32 %v341, 0.01
    %v486 = vmul.f32 %v343, 0.01
    %v487 = vmul.f32 %v232, 0.01
    %v488 = vmul.f32 %v234, 0.01
    %v489 = vmul.f32 %v345, 0.01
    %v490 = vmul.f32 %v347, 0.01
    %v491 = vmul.f32 %v238, 0.01
    %v492 = vmul.f32 %v240, 0.01
    %v493 = vmul.f32 %v351, 0.01
    %v494 = vmul.f32 %v353, 0.01
    %v495 = vmul.f32 %v242, 0.01
    %v496 = vmul.f32 %v244, 0.01
    %v497 = vmul.f32 %v355, 0.01
    %v498 = vmul.f32 %v357, 0.01
    %v499 = vmul.f32 %v248, 0.01
    %v500 = vmul.f32 %v250, 0.01
    %v501 = vmul.f32 %v361, 0.01
    %v502 = vmul.f32 %v363, 0.01
    %v503 = vmul.f32 %v252, 0.01
    %v504 = vmul.f32 %v254, 0.01
    %v505 = vmul.f32 %v365, 0.01
    %v506 = vmul.f32 %v367, 0.01
    %v507 = vmul.f32 %v258, 0.01
    %v508 = vmul.f32 %v260, 0.01
    %v509 = vmul.f32 %v371, 0.01
    %v510 = vmul.f32 %v373, 0.01
    %v511 = vmul.f32 %v262, 0.01
    %v512 = vmul.f32 %v264, 0.01
    %v513 = vmul.f32 %v375, 0.01
    %v514 = vmul.f32 %v377, 0.01
    %v515 = vmul.f32 %v268, 0.01
    %v516 = vmul.f32 %v270, 0.01
    %v517 = vmul.f32 %v381, 0.01
    %v518 = vmul.f32 %v383, 0.01
    %v519 = vmul.f32 %v272, 0.01
    %v520 = vmul.f32 %v274, 0.01
    %v521 = vmul.f32 %v385, 0.01
    %v522 = vmul.f32 %v387, 0.01
    %v523 = vmul.f32 %v278, 0.01
    %v524 = vmul.f32 %v280, 0.01
    %v525 = vmul.f32 %v391, 0.01
    %v526 = vmul.f32 %v393, 0.01
    %v527 = vmul.f32 %v282, 0.01
    %v528 = vmul.f32 %v284, 0.01
    %v529 = vmul.f32 %v395, 0.01
    %v530 = vmul.f32 %v397, 0.01
    %v531 = vmul.f32 %v288, 0.01
    %v532 = vmul.f32 %v290, 0.01
    %v533 = vmul.f32 %v401, 0.01
    %v534 = vmul.f32 %v403, 0.01
    %v535 = vmul.f32 %v292, 0.01
    %v536 = vmul.f32 %v294, 0.01
    %v537 = vmul.f32 %v405, 0.01
    %v538 = vmul.f32 %v407, 0.01
    %v539 = vmul.f32 %v298, 0.01
    %v540 = vmul.f32 %v300, 0.01
    %v541 = vmul.f32 %v411, 0.01
    %v542 = vmul.f32 %v413, 0.01
    %v543 = vmul.f32 %v302, 0.01
    %v544 = vmul.f32 %v304, 0.01
    %v545 = vmul.f32 %v415, 0.01
    %v546 = vmul.f32 %v417, 0.01
    %v547 = vsel %vm419, %v228, %v483
    %v548 = vsel %vm420, %v230, %v484
    %v549 = vsel %vm421, %v341, %v485
    %v550 = vsel %vm422, %v343, %v486
    %v551 = vsel %vm423, %v232, %v487
    %v552 = vsel %vm424, %v234, %v488
    %v553 = vsel %vm425, %v345, %v489
    %v554 = vsel %vm426, %v347, %v490
    %v555 = vsel %vm427, %v238, %v491
    %v556 = vsel %vm428, %v240, %v492
    %v557 = vsel %vm429, %v351, %v493
    %v558 = vsel %vm430, %v353, %v494
    %v559 = vsel %vm431, %v242, %v495
    %v560 = vsel %vm432, %v244, %v496
    %v561 = vsel %vm433, %v355, %v497
    %v562 = vsel %vm434, %v357, %v498
    %v563 = vsel %vm435, %v248, %v499
    %v564 = vsel %vm436, %v250, %v500
    %v565 = vsel %vm437, %v361, %v501
    %v566 = vsel %vm438, %v363, %v502
    %v567 = vsel %vm439, %v252, %v503
    %v568 = vsel %vm440, %v254, %v504
    %v569 = vsel %vm441, %v365, %v505
    %v570 = vsel %vm442, %v367, %v506
    %v571 = vsel %vm443, %v258, %v507
    %v572 = vsel %vm444, %v260, %v508
    %v573 = vsel %vm445, %v371, %v509
    %v574 = vsel %vm446, %v373, %v510
    %v575 = vsel %vm447, %v262, %v511
    %v576 = vsel %vm448, %v264, %v512
    %v577 = vsel %vm449, %v375, %v513
    %v578 = vsel %vm450, %v377, %v514
    %v579 = vsel %vm451, %v268, %v515
    %v580 = vsel %vm452, %v270, %v516
    %v581 = vsel %vm453, %v381, %v517
    %v582 = vsel %vm454, %v383, %v518
    %v583 = vsel %vm455, %v272, %v519
    %v584 = vsel %vm456, %v274, %v520
    %v585 = vsel %vm457, %v385, %v521
    %v586 = vsel %vm458, %v387, %v522
    %v587 = vsel %vm459, %v278, %v523
    %v588 = vsel %vm460, %v280, %v524
    %v589 = vsel %vm461, %v391, %v525
    %v590 = vsel %vm462, %v393, %v526
    %v591 = vsel %vm463, %v282, %v527
    %v592 = vsel %vm464, %v284, %v528
    %v593 = vsel %vm465, %v395, %v529
    %v594 = vsel %vm466, %v397, %v530
    %v595 = vsel %vm467, %v288, %v531
    %v596 = vsel %vm468, %v290, %v532
    %v597 = vsel %vm469, %v401, %v533
    %v598 = vsel %vm470, %v403, %v534
    %v599 = vsel %vm471, %v292, %v535
    %v600 = vsel %vm472, %v294, %v536
    %v601 = vsel %vm473, %v405, %v537
    %v602 = vsel %vm474, %v407, %v538
    %v603 = vsel %vm475, %v298, %v539
    %v604 = vsel %vm476, %v300, %v540
    %v605 = vsel %vm477, %v411, %v541
    %v606 = vsel %vm478, %v413, %v542
    %v607 = vsel %vm479, %v302, %v543
    %v608 = vsel %vm480, %v304, %v544
    %v609 = vsel %vm481, %v415, %v545
    %v610 = vsel %vm482, %v417, %v546
    %v611 = vpack.c.bf16 %v551, %v547
    %v612 = vpack.c.bf16 %v552, %v548
    %v613 = vpack.c.bf16 %v553, %v549
    %v614 = vpack.c.bf16 %v554, %v550
    %v615 = vpack.c.bf16 %v559, %v555
    %v616 = vpack.c.bf16 %v560, %v556
    %v617 = vpack.c.bf16 %v561, %v557
    %v618 = vpack.c.bf16 %v562, %v558
    %v619 = vpack.c.bf16 %v567, %v563
    %v620 = vpack.c.bf16 %v568, %v564
    %v621 = vpack.c.bf16 %v569, %v565
    %v622 = vpack.c.bf16 %v570, %v566
    %v623 = vpack.c.bf16 %v575, %v571
    %v624 = vpack.c.bf16 %v576, %v572
    %v625 = vpack.c.bf16 %v577, %v573
    %v626 = vpack.c.bf16 %v578, %v574
    %v627 = vpack.c.bf16 %v583, %v579
    %v628 = vpack.c.bf16 %v584, %v580
    %v629 = vpack.c.bf16 %v585, %v581
    %v630 = vpack.c.bf16 %v586, %v582
    %v631 = vpack.c.bf16 %v591, %v587
    %v632 = vpack.c.bf16 %v592, %v588
    %v633 = vpack.c.bf16 %v593, %v589
    %v634 = vpack.c.bf16 %v594, %v590
    %v635 = vpack.c.bf16 %v599, %v595
    %v636 = vpack.c.bf16 %v600, %v596
    %v637 = vpack.c.bf16 %v601, %v597
    %v638 = vpack.c.bf16 %v602, %v598
    %v639 = vpack.c.bf16 %v607, %v603
    %v640 = vpack.c.bf16 %v608, %v604
    %v641 = vpack.c.bf16 %v609, %v605
    %v642 = vpack.c.bf16 %v610, %v606
    %v643 = vld [vmem:[#allocation2] sm:$0xff]
    %v644 = vld [vmem:[#allocation2 + $0x8] sm:$0xff]
    %v645 = vld [vmem:[#allocation2 + $0x10] sm:$0xff]
    %v646 = vld [vmem:[#allocation2 + $0x18] sm:$0xff]
    %v647 = vld [vmem:[#allocation2 + $0x20] sm:$0xff]
    %v648 = vld [vmem:[#allocation2 + $0x28] sm:$0xff]
    %v649 = vld [vmem:[#allocation2 + $0x30] sm:$0xff]
    %v650 = vld [vmem:[#allocation2 + $0x38] sm:$0xff]
    %v651 = vld [vmem:[#allocation2 + $0x40] sm:$0xff]
    %v652 = vld [vmem:[#allocation2 + $0x48] sm:$0xff]
    %v653 = vld [vmem:[#allocation2 + $0x50] sm:$0xff]
    %v654 = vld [vmem:[#allocation2 + $0x58] sm:$0xff]
    %v655 = vld [vmem:[#allocation2 + $0x60] sm:$0xff]
    %v656 = vld [vmem:[#allocation2 + $0x68] sm:$0xff]
    %v657 = vld [vmem:[#allocation2 + $0x70] sm:$0xff]
    %v658 = vld [vmem:[#allocation2 + $0x78] sm:$0xff]
    %v659 = vld [vmem:[#allocation2 + $0x80] sm:$0xff]
    %v660 = vld [vmem:[#allocation2 + $0x88] sm:$0xff]
    %v661 = vld [vmem:[#allocation2 + $0x90] sm:$0xff]
    %v662 = vld [vmem:[#allocation2 + $0x98] sm:$0xff]
    %v663 = vld [vmem:[#allocation2 + $0xa0] sm:$0xff]
    %v664 = vld [vmem:[#allocation2 + $0xa8] sm:$0xff]
    %v665 = vld [vmem:[#allocation2 + $0xb0] sm:$0xff]
    %v666 = vld [vmem:[#allocation2 + $0xb8] sm:$0xff]
    %v667 = vld [vmem:[#allocation2 + $0xc0] sm:$0xff]
    %v668 = vld [vmem:[#allocation2 + $0xc8] sm:$0xff]
    %v669 = vld [vmem:[#allocation2 + $0xd0] sm:$0xff]
    %v670 = vld [vmem:[#allocation2 + $0xd8] sm:$0xff]
    %v671 = vld [vmem:[#allocation2 + $0xe0] sm:$0xff]
    %v672 = vld [vmem:[#allocation2 + $0xe8] sm:$0xff]
    %v673 = vld [vmem:[#allocation2 + $0xf0] sm:$0xff]
    %v674 = vld [vmem:[#allocation2 + $0xf8] sm:$0xff]
    %v675 = vld [vmem:[#allocation2 + $0x100] sm:$0xff]
    %v676 = vld [vmem:[#allocation2 + $0x108] sm:$0xff]
    %v677 = vld [vmem:[#allocation2 + $0x110] sm:$0xff]
    %v678 = vld [vmem:[#allocation2 + $0x118] sm:$0xff]
    %v679 = vld [vmem:[#allocation2 + $0x120] sm:$0xff]
    %v680 = vld [vmem:[#allocation2 + $0x128] sm:$0xff]
    %v681 = vld [vmem:[#allocation2 + $0x130] sm:$0xff]
    %v682 = vld [vmem:[#allocation2 + $0x138] sm:$0xff]
    %v683 = vld [vmem:[#allocation2 + $0x140] sm:$0xff]
    %v684 = vld [vmem:[#allocation2 + $0x148] sm:$0xff]
    %v685 = vld [vmem:[#allocation2 + $0x150] sm:$0xff]
    %v686 = vld [vmem:[#allocation2 + $0x158] sm:$0xff]
    %v687 = vld [vmem:[#allocation2 + $0x160] sm:$0xff]
    %v688 = vld [vmem:[#allocation2 + $0x168] sm:$0xff]
    %v689 = vld [vmem:[#allocation2 + $0x170] sm:$0xff]
    %v690 = vld [vmem:[#allocation2 + $0x178] sm:$0xff]
    %v691 = vld [vmem:[#allocation2 + $0x180] sm:$0xff]
    %v692 = vld [vmem:[#allocation2 + $0x188] sm:$0xff]
    %v693 = vld [vmem:[#allocation2 + $0x190] sm:$0xff]
    %v694 = vld [vmem:[#allocation2 + $0x198] sm:$0xff]
    %v695 = vld [vmem:[#allocation2 + $0x1a0] sm:$0xff]
    %v696 = vld [vmem:[#allocation2 + $0x1a8] sm:$0xff]
    %v697 = vld [vmem:[#allocation2 + $0x1b0] sm:$0xff]
    %v698 = vld [vmem:[#allocation2 + $0x1b8] sm:$0xff]
    %v699 = vld [vmem:[#allocation2 + $0x1c0] sm:$0xff]
    %v700 = vld [vmem:[#allocation2 + $0x1c8] sm:$0xff]
    %v701 = vld [vmem:[#allocation2 + $0x1d0] sm:$0xff]
    %v702 = vld [vmem:[#allocation2 + $0x1d8] sm:$0xff]
    %v703 = vld [vmem:[#allocation2 + $0x1e0] sm:$0xff]
    %v704 = vld [vmem:[#allocation2 + $0x1e8] sm:$0xff]
    %v705 = vld [vmem:[#allocation2 + $0x1f0] sm:$0xff]
    %v706 = vld [vmem:[#allocation2 + $0x1f8] sm:$0xff]
    %v707 = vld [vmem:[%s4] sm:$0x3]
    %v709 = vlaneseq
    %v710 = vshrl.u32 %v709, 7
    %v711 = vsub.s32 0, %v710
    %v712 = vrot.slane %v707, %v711
    %v713 = vlaneseq
    %v714 = vshrl.u32 %v713, 7
    %v715 = vsub.s32 1, %v714
    %v716 = vrot.slane %v707, %v715
    %v783 = vunpack.c.l.b16 %v643
    %v784 = vunpack.c.h.b16 %v643
    %v785 = vunpack.c.l.b16 %v644
    %v786 = vunpack.c.h.b16 %v644
    %v787 = vunpack.c.l.b16 %v645
    %v788 = vunpack.c.h.b16 %v645
    %v789 = vunpack.c.l.b16 %v646
    %v790 = vunpack.c.h.b16 %v646
    %v791 = vunpack.c.l.b16 %v647
    %v792 = vunpack.c.h.b16 %v647
    %v793 = vunpack.c.l.b16 %v648
    %v794 = vunpack.c.h.b16 %v648
    %v795 = vunpack.c.l.b16 %v649
    %v796 = vunpack.c.h.b16 %v649
    %v797 = vunpack.c.l.b16 %v650
    %v798 = vunpack.c.h.b16 %v650
    %v799 = vunpack.c.l.b16 %v651
    %v800 = vunpack.c.h.b16 %v651
    %v801 = vunpack.c.l.b16 %v652
    %v802 = vunpack.c.h.b16 %v652
    %v803 = vunpack.c.l.b16 %v653
    %v804 = vunpack.c.h.b16 %v653
    %v805 = vunpack.c.l.b16 %v654
    %v806 = vunpack.c.h.b16 %v654
    %v807 = vunpack.c.l.b16 %v655
    %v808 = vunpack.c.h.b16 %v655
    %v809 = vunpack.c.l.b16 %v656
    %v810 = vunpack.c.h.b16 %v656
    %v811 = vunpack.c.l.b16 %v657
    %v812 = vunpack.c.h.b16 %v657
    %v813 = vunpack.c.l.b16 %v658
    %v814 = vunpack.c.h.b16 %v658
    %v815 = vunpack.c.l.b16 %v659
    %v816 = vunpack.c.h.b16 %v659
    %v817 = vunpack.c.l.b16 %v660
    %v818 = vunpack.c.h.b16 %v660
    %v819 = vunpack.c.l.b16 %v661
    %v820 = vunpack.c.h.b16 %v661
    %v821 = vunpack.c.l.b16 %v662
    %v822 = vunpack.c.h.b16 %v662
    %v823 = vunpack.c.l.b16 %v663
    %v824 = vunpack.c.h.b16 %v663
    %v825 = vunpack.c.l.b16 %v664
    %v826 = vunpack.c.h.b16 %v664
    %v827 = vunpack.c.l.b16 %v665
    %v828 = vunpack.c.h.b16 %v665
    %v829 = vunpack.c.l.b16 %v666
    %v830 = vunpack.c.h.b16 %v666
    %v831 = vunpack.c.l.b16 %v667
    %v832 = vunpack.c.h.b16 %v667
    %v833 = vunpack.c.l.b16 %v668
    %v834 = vunpack.c.h.b16 %v668
    %v835 = vunpack.c.l.b16 %v669
    %v836 = vunpack.c.h.b16 %v669
    %v837 = vunpack.c.l.b16 %v670
    %v838 = vunpack.c.h.b16 %v670
    %v839 = vunpack.c.l.b16 %v671
    %v840 = vunpack.c.h.b16 %v671
    %v841 = vunpack.c.l.b16 %v672
    %v842 = vunpack.c.h.b16 %v672
    %v843 = vunpack.c.l.b16 %v673
    %v844 = vunpack.c.h.b16 %v673
    %v845 = vunpack.c.l.b16 %v674
    %v846 = vunpack.c.h.b16 %v674
    %v847 = vunpack.c.l.b16 %v675
    %v848 = vunpack.c.h.b16 %v675
    %v849 = vunpack.c.l.b16 %v676
    %v850 = vunpack.c.h.b16 %v676
    %v851 = vunpack.c.l.b16 %v677
    %v852 = vunpack.c.h.b16 %v677
    %v853 = vunpack.c.l.b16 %v678
    %v854 = vunpack.c.h.b16 %v678
    %v855 = vunpack.c.l.b16 %v679
    %v856 = vunpack.c.h.b16 %v679
    %v857 = vunpack.c.l.b16 %v680
    %v858 = vunpack.c.h.b16 %v680
    %v859 = vunpack.c.l.b16 %v681
    %v860 = vunpack.c.h.b16 %v681
    %v861 = vunpack.c.l.b16 %v682
    %v862 = vunpack.c.h.b16 %v682
    %v863 = vunpack.c.l.b16 %v683
    %v864 = vunpack.c.h.b16 %v683
    %v865 = vunpack.c.l.b16 %v684
    %v866 = vunpack.c.h.b16 %v684
    %v867 = vunpack.c.l.b16 %v685
    %v868 = vunpack.c.h.b16 %v685
    %v869 = vunpack.c.l.b16 %v686
    %v870 = vunpack.c.h.b16 %v686
    %v871 = vunpack.c.l.b16 %v687
    %v872 = vunpack.c.h.b16 %v687
    %v873 = vunpack.c.l.b16 %v688
    %v874 = vunpack.c.h.b16 %v688
    %v875 = vunpack.c.l.b16 %v689
    %v876 = vunpack.c.h.b16 %v689
    %v877 = vunpack.c.l.b16 %v690
    %v878 = vunpack.c.h.b16 %v690
    %v879 = vunpack.c.l.b16 %v691
    %v880 = vunpack.c.h.b16 %v691
    %v881 = vunpack.c.l.b16 %v692
    %v882 = vunpack.c.h.b16 %v692
    %v883 = vunpack.c.l.b16 %v693
    %v884 = vunpack.c.h.b16 %v693
    %v885 = vunpack.c.l.b16 %v694
    %v886 = vunpack.c.h.b16 %v694
    %v887 = vunpack.c.l.b16 %v695
    %v888 = vunpack.c.h.b16 %v695
    %v889 = vunpack.c.l.b16 %v696
    %v890 = vunpack.c.h.b16 %v696
    %v891 = vunpack.c.l.b16 %v697
    %v892 = vunpack.c.h.b16 %v697
    %v893 = vunpack.c.l.b16 %v698
    %v894 = vunpack.c.h.b16 %v698
    %v895 = vunpack.c.l.b16 %v699
    %v896 = vunpack.c.h.b16 %v699
    %v897 = vunpack.c.l.b16 %v700
    %v898 = vunpack.c.h.b16 %v700
    %v899 = vunpack.c.l.b16 %v701
    %v900 = vunpack.c.h.b16 %v701
    %v901 = vunpack.c.l.b16 %v702
    %v902 = vunpack.c.h.b16 %v702
    %v903 = vunpack.c.l.b16 %v703
    %v904 = vunpack.c.h.b16 %v703
    %v905 = vunpack.c.l.b16 %v704
    %v906 = vunpack.c.h.b16 %v704
    %v907 = vunpack.c.l.b16 %v705
    %v908 = vunpack.c.h.b16 %v705
    %v909 = vunpack.c.l.b16 %v706
    %v910 = vunpack.c.h.b16 %v706
    %v911 = vpack.c.b16 %v785, %v783
    %v912 = vpack.c.b16 %v786, %v784
    %v913 = vpack.c.b16 %v789, %v787
    %v914 = vpack.c.b16 %v790, %v788
    %v915 = vpack.c.b16 %v793, %v791
    %v916 = vpack.c.b16 %v794, %v792
    %v917 = vpack.c.b16 %v797, %v795
    %v918 = vpack.c.b16 %v798, %v796
    %v919 = vpack.c.b16 %v801, %v799
    %v920 = vpack.c.b16 %v802, %v800
    %v921 = vpack.c.b16 %v805, %v803
    %v922 = vpack.c.b16 %v806, %v804
    %v923 = vpack.c.b16 %v809, %v807
    %v924 = vpack.c.b16 %v810, %v808
    %v925 = vpack.c.b16 %v813, %v811
    %v926 = vpack.c.b16 %v814, %v812
    %v927 = vpack.c.b16 %v817, %v815
    %v928 = vpack.c.b16 %v818, %v816
    %v929 = vpack.c.b16 %v821, %v819
    %v930 = vpack.c.b16 %v822, %v820
    %v931 = vpack.c.b16 %v825, %v823
    %v932 = vpack.c.b16 %v826, %v824
    %v933 = vpack.c.b16 %v829, %v827
    %v934 = vpack.c.b16 %v830, %v828
    %v935 = vpack.c.b16 %v833, %v831
    %v936 = vpack.c.b16 %v834, %v832
    %v937 = vpack.c.b16 %v837, %v835
    %v938 = vpack.c.b16 %v838, %v836
    %v939 = vpack.c.b16 %v841, %v839
    %v940 = vpack.c.b16 %v842, %v840
    %v941 = vpack.c.b16 %v845, %v843
    %v942 = vpack.c.b16 %v846, %v844
    %v943 = vpack.c.b16 %v849, %v847
    %v944 = vpack.c.b16 %v850, %v848
    %v945 = vpack.c.b16 %v853, %v851
    %v946 = vpack.c.b16 %v854, %v852
    %v947 = vpack.c.b16 %v857, %v855
    %v948 = vpack.c.b16 %v858, %v856
    %v949 = vpack.c.b16 %v861, %v859
    %v950 = vpack.c.b16 %v862, %v860
    %v951 = vpack.c.b16 %v865, %v863
    %v952 = vpack.c.b16 %v866, %v864
    %v953 = vpack.c.b16 %v869, %v867
    %v954 = vpack.c.b16 %v870, %v868
    %v955 = vpack.c.b16 %v873, %v871
    %v956 = vpack.c.b16 %v874, %v872
    %v957 = vpack.c.b16 %v877, %v875
    %v958 = vpack.c.b16 %v878, %v876
    %v959 = vpack.c.b16 %v881, %v879
    %v960 = vpack.c.b16 %v882, %v880
    %v961 = vpack.c.b16 %v885, %v883
    %v962 = vpack.c.b16 %v886, %v884
    %v963 = vpack.c.b16 %v889, %v887
    %v964 = vpack.c.b16 %v890, %v888
    %v965 = vpack.c.b16 %v893, %v891
    %v966 = vpack.c.b16 %v894, %v892
    %v967 = vpack.c.b16 %v897, %v895
    %v968 = vpack.c.b16 %v898, %v896
    %v969 = vpack.c.b16 %v901, %v899
    %v970 = vpack.c.b16 %v902, %v900
    %v971 = vpack.c.b16 %v905, %v903
    %v972 = vpack.c.b16 %v906, %v904
    %v973 = vpack.c.b16 %v909, %v907
    %v974 = vpack.c.b16 %v910, %v908
    %1039 = vmatprep.subr.bf16.mxu0 %v926
    %1040 = vmatpush1.bf16.msra.mxu0 %v925
    %1041 = vmatprep.subr.bf16.mxu0 %v924
    %1042 = vmatpush1.bf16.msra.mxu0 %v923
    %1043 = vmatprep.subr.bf16.mxu0 %v922
    %1044 = vmatpush1.bf16.msra.mxu0 %v921
    %1045 = vmatprep.subr.bf16.mxu0 %v920
    %1046 = vmatpush1.bf16.msra.mxu0 %v919
    %1047 = vmatprep.subr.bf16.mxu0 %v918
    %1048 = vmatpush1.bf16.msra.mxu0 %v917
    %1049 = vmatprep.subr.bf16.mxu0 %v916
    %1050 = vmatpush1.bf16.msra.mxu0 %v915
    %1051 = vmatprep.subr.bf16.mxu0 %v914
    %1052 = vmatpush1.bf16.msra.mxu0 %v913
    %1053 = vmatprep.subr.bf16.mxu0 %v912
    %1054 = vmatpush1.bf16.msra.mxu0 %v911
    %1055 = vmatprep.subr.bf16.mxu0 %v942
    %1056 = vmatpush2.bf16.msra.mxu0 %v941
    %1057 = vmatprep.subr.bf16.mxu0 %v940
    %1058 = vmatpush2.bf16.msra.mxu0 %v939
    %1059 = vmatprep.subr.bf16.mxu0 %v938
    %1060 = vmatpush2.bf16.msra.mxu0 %v937
    %1061 = vmatprep.subr.bf16.mxu0 %v936
    %1062 = vmatpush2.bf16.msra.mxu0 %v935
    %1063 = vmatprep.subr.bf16.mxu0 %v934
    %1064 = vmatpush2.bf16.msra.mxu0 %v933
    %1065 = vmatprep.subr.bf16.mxu0 %v932
    %1066 = vmatpush2.bf16.msra.mxu0 %v931
    %1067 = vmatprep.subr.bf16.mxu0 %v930
    %1068 = vmatpush2.bf16.msra.mxu0 %v929
    %1069 = vmatprep.subr.bf16.mxu0 %v928
    %1070 = vmatpush2.bf16.msra.mxu0 %v927
    %1071 = vmatprep.mubr.bf16.mxu0 %v612
    %1072 = vmatmul.mubr.bf16.gmra.mxu0 %v611
    %v1073 = vpop.f32.mrf.mxu0
    %v1074 = vadd.f32 %v712, %v1073
    %v1075 = vpop.f32.mrf.mxu0
    %v1076 = vadd.f32 %v716, %v1075
    %v1077 = vpop.f32.mrf.mxu0
    %v1078 = vadd.f32 %v712, %v1077
    %v1079 = vpop.f32.mrf.mxu0
    %v1080 = vadd.f32 %v716, %v1079
    %1081 = vmatprep.mubr.bf16.mxu0 %v616
    %1082 = vmatmul.mubr.bf16.gmra.mxu0 %v615
    %v1083 = vpop.f32.mrf.mxu0
    %v1084 = vadd.f32 %v712, %v1083
    %v1085 = vpop.f32.mrf.mxu0
    %v1086 = vadd.f32 %v716, %v1085
    %v1087 = vpop.f32.mrf.mxu0
    %v1088 = vadd.f32 %v712, %v1087
    %v1089 = vpop.f32.mrf.mxu0
    %v1090 = vadd.f32 %v716, %v1089
    %1091 = vmatprep.mubr.bf16.mxu0 %v620
    %1092 = vmatmul.mubr.bf16.gmra.mxu0 %v619
    %v1093 = vpop.f32.mrf.mxu0
    %v1094 = vadd.f32 %v712, %v1093
    %v1095 = vpop.f32.mrf.mxu0
    %v1096 = vadd.f32 %v716, %v1095
    %v1097 = vpop.f32.mrf.mxu0
    %v1098 = vadd.f32 %v712, %v1097
    %v1099 = vpop.f32.mrf.mxu0
    %v1100 = vadd.f32 %v716, %v1099
    %1101 = vmatprep.mubr.bf16.mxu0 %v624
    %1102 = vmatmul.mubr.bf16.gmra.mxu0 %v623
    %v1103 = vpop.f32.mrf.mxu0
    %v1104 = vadd.f32 %v712, %v1103
    %v1105 = vpop.f32.mrf.mxu0
    %v1106 = vadd.f32 %v716, %v1105
    %v1107 = vpop.f32.mrf.mxu0
    %v1108 = vadd.f32 %v712, %v1107
    %v1109 = vpop.f32.mrf.mxu0
    %v1110 = vadd.f32 %v716, %v1109
    %1111 = vmatprep.mubr.bf16.mxu0 %v628
    %1112 = vmatmul.mubr.bf16.gmra.mxu0 %v627
    %v1113 = vpop.f32.mrf.mxu0
    %v1114 = vadd.f32 %v712, %v1113
    %v1115 = vpop.f32.mrf.mxu0
    %v1116 = vadd.f32 %v716, %v1115
    %v1117 = vpop.f32.mrf.mxu0
    %v1118 = vadd.f32 %v712, %v1117
    %v1119 = vpop.f32.mrf.mxu0
    %v1120 = vadd.f32 %v716, %v1119
    %1121 = vmatprep.mubr.bf16.mxu0 %v632
    %1122 = vmatmul.mubr.bf16.gmra.mxu0 %v631
    %v1123 = vpop.f32.mrf.mxu0
    %v1124 = vadd.f32 %v712, %v1123
    %v1125 = vpop.f32.mrf.mxu0
    %v1126 = vadd.f32 %v716, %v1125
    %v1127 = vpop.f32.mrf.mxu0
    %v1128 = vadd.f32 %v712, %v1127
    %v1129 = vpop.f32.mrf.mxu0
    %v1130 = vadd.f32 %v716, %v1129
    %1131 = vmatprep.mubr.bf16.mxu0 %v636
    %1132 = vmatmul.mubr.bf16.gmra.mxu0 %v635
    %v1133 = vpop.f32.mrf.mxu0
    %v1134 = vadd.f32 %v712, %v1133
    %v1135 = vpop.f32.mrf.mxu0
    %v1136 = vadd.f32 %v716, %v1135
    %v1137 = vpop.f32.mrf.mxu0
    %v1138 = vadd.f32 %v712, %v1137
    %v1139 = vpop.f32.mrf.mxu0
    %v1140 = vadd.f32 %v716, %v1139
    %1141 = vmatprep.mubr.bf16.mxu0 %v640
    %1142 = vmatmul.mubr.bf16.gmra.mxu0 %v639
    %v1143 = vpop.f32.mrf.mxu0
    %v1144 = vadd.f32 %v712, %v1143
    %v1145 = vpop.f32.mrf.mxu0
    %v1146 = vadd.f32 %v716, %v1145
    %v1147 = vpop.f32.mrf.mxu0
    %v1148 = vadd.f32 %v712, %v1147
    %v1149 = vpop.f32.mrf.mxu0
    %v1150 = vadd.f32 %v716, %v1149
    %1151 = vdwg.mxu0
    %1152 = vmatprep.subr.bf16.mxu0 %v958
    %1153 = vmatpush1.bf16.msra.mxu0 %v957
    %1154 = vmatprep.subr.bf16.mxu0 %v956
    %1155 = vmatpush1.bf16.msra.mxu0 %v955
    %1156 = vmatprep.subr.bf16.mxu0 %v954
    %1157 = vmatpush1.bf16.msra.mxu0 %v953
    %1158 = vmatprep.subr.bf16.mxu0 %v952
    %1159 = vmatpush1.bf16.msra.mxu0 %v951
    %1160 = vmatprep.subr.bf16.mxu0 %v950
    %1161 = vmatpush1.bf16.msra.mxu0 %v949
    %1162 = vmatprep.subr.bf16.mxu0 %v948
    %1163 = vmatpush1.bf16.msra.mxu0 %v947
    %1164 = vmatprep.subr.bf16.mxu0 %v946
    %1165 = vmatpush1.bf16.msra.mxu0 %v945
    %1166 = vmatprep.subr.bf16.mxu0 %v944
    %1167 = vmatpush1.bf16.msra.mxu0 %v943
    %1168 = vmatprep.subr.bf16.mxu0 %v974
    %1169 = vmatpush2.bf16.msra.mxu0 %v973
    %1170 = vmatprep.subr.bf16.mxu0 %v972
    %1171 = vmatpush2.bf16.msra.mxu0 %v971
    %1172 = vmatprep.subr.bf16.mxu0 %v970
    %1173 = vmatpush2.bf16.msra.mxu0 %v969
    %1174 = vmatprep.subr.bf16.mxu0 %v968
    %1175 = vmatpush2.bf16.msra.mxu0 %v967
    %1176 = vmatprep.subr.bf16.mxu0 %v966
    %1177 = vmatpush2.bf16.msra.mxu0 %v965
    %1178 = vmatprep.subr.bf16.mxu0 %v964
    %1179 = vmatpush2.bf16.msra.mxu0 %v963
    %1180 = vmatprep.subr.bf16.mxu0 %v962
    %1181 = vmatpush2.bf16.msra.mxu0 %v961
    %1182 = vmatprep.subr.bf16.mxu0 %v960
    %1183 = vmatpush2.bf16.msra.mxu0 %v959
    %1184 = vmatprep.mubr.bf16.mxu0 %v614
    %1185 = vmatmul.mubr.bf16.gmra.mxu0 %v613
    %v1186 = vpop.f32.mrf.mxu0
    %v1187 = vadd.f32 %v1074, %v1186
    %v1188 = vpop.f32.mrf.mxu0
    %v1189 = vadd.f32 %v1076, %v1188
    %v1190 = vpop.f32.mrf.mxu0
    %v1191 = vadd.f32 %v1078, %v1190
    %v1192 = vpop.f32.mrf.mxu0
    %v1193 = vadd.f32 %v1080, %v1192
    %1194 = vmatprep.mubr.bf16.mxu0 %v618
    %1195 = vmatmul.mubr.bf16.gmra.mxu0 %v617
    %v1196 = vpop.f32.mrf.mxu0
    %v1197 = vadd.f32 %v1084, %v1196
    %v1198 = vpop.f32.mrf.mxu0
    %v1199 = vadd.f32 %v1086, %v1198
    %v1200 = vpop.f32.mrf.mxu0
    %v1201 = vadd.f32 %v1088, %v1200
    %v1202 = vpop.f32.mrf.mxu0
    %v1203 = vadd.f32 %v1090, %v1202
    %1204 = vmatprep.mubr.bf16.mxu0 %v622
    %1205 = vmatmul.mubr.bf16.gmra.mxu0 %v621
    %v1206 = vpop.f32.mrf.mxu0
    %v1207 = vadd.f32 %v1094, %v1206
    %v1208 = vpop.f32.mrf.mxu0
    %v1209 = vadd.f32 %v1096, %v1208
    %v1210 = vpop.f32.mrf.mxu0
    %v1211 = vadd.f32 %v1098, %v1210
    %v1212 = vpop.f32.mrf.mxu0
    %v1213 = vadd.f32 %v1100, %v1212
    %1214 = vmatprep.mubr.bf16.mxu0 %v626
    %1215 = vmatmul.mubr.bf16.gmra.mxu0 %v625
    %v1216 = vpop.f32.mrf.mxu0
    %v1217 = vadd.f32 %v1104, %v1216
    %v1218 = vpop.f32.mrf.mxu0
    %v1219 = vadd.f32 %v1106, %v1218
    %v1220 = vpop.f32.mrf.mxu0
    %v1221 = vadd.f32 %v1108, %v1220
    %v1222 = vpop.f32.mrf.mxu0
    %v1223 = vadd.f32 %v1110, %v1222
    %1224 = vmatprep.mubr.bf16.mxu0 %v630
    %1225 = vmatmul.mubr.bf16.gmra.mxu0 %v629
    %v1226 = vpop.f32.mrf.mxu0
    %v1227 = vadd.f32 %v1114, %v1226
    %v1228 = vpop.f32.mrf.mxu0
    %v1229 = vadd.f32 %v1116, %v1228
    %v1230 = vpop.f32.mrf.mxu0
    %v1231 = vadd.f32 %v1118, %v1230
    %v1232 = vpop.f32.mrf.mxu0
    %v1233 = vadd.f32 %v1120, %v1232
    %1234 = vmatprep.mubr.bf16.mxu0 %v634
    %1235 = vmatmul.mubr.bf16.gmra.mxu0 %v633
    %v1236 = vpop.f32.mrf.mxu0
    %v1237 = vadd.f32 %v1124, %v1236
    %v1238 = vpop.f32.mrf.mxu0
    %v1239 = vadd.f32 %v1126, %v1238
    %v1240 = vpop.f32.mrf.mxu0
    %v1241 = vadd.f32 %v1128, %v1240
    %v1242 = vpop.f32.mrf.mxu0
    %v1243 = vadd.f32 %v1130, %v1242
    %1244 = vmatprep.mubr.bf16.mxu0 %v638
    %1245 = vmatmul.mubr.bf16.gmra.mxu0 %v637
    %v1246 = vpop.f32.mrf.mxu0
    %v1247 = vadd.f32 %v1134, %v1246
    %v1248 = vpop.f32.mrf.mxu0
    %v1249 = vadd.f32 %v1136, %v1248
    %v1250 = vpop.f32.mrf.mxu0
    %v1251 = vadd.f32 %v1138, %v1250
    %v1252 = vpop.f32.mrf.mxu0
    %v1253 = vadd.f32 %v1140, %v1252
    %1254 = vmatprep.mubr.bf16.mxu0 %v642
    %1255 = vmatmul.mubr.bf16.gmra.mxu0 %v641
    %v1256 = vpop.f32.mrf.mxu0
    %v1257 = vadd.f32 %v1144, %v1256
    %v1258 = vpop.f32.mrf.mxu0
    %v1259 = vadd.f32 %v1146, %v1258
    %v1260 = vpop.f32.mrf.mxu0
    %v1261 = vadd.f32 %v1148, %v1260
    %v1262 = vpop.f32.mrf.mxu0
    %v1263 = vadd.f32 %v1150, %v1262
    %1264 = vdwg.mxu0
    %vm1265 = vcmp.ge.f32.partialorder %v1187, 0.0
    %vm1266 = vcmp.ge.f32.partialorder %v1189, 0.0
    %vm1267 = vcmp.ge.f32.partialorder %v1191, 0.0
    %vm1268 = vcmp.ge.f32.partialorder %v1193, 0.0
    %vm1269 = vcmp.ge.f32.partialorder %v1197, 0.0
    %vm1270 = vcmp.ge.f32.partialorder %v1199, 0.0
    %vm1271 = vcmp.ge.f32.partialorder %v1201, 0.0
    %vm1272 = vcmp.ge.f32.partialorder %v1203, 0.0
    %vm1273 = vcmp.ge.f32.partialorder %v1207, 0.0
    %vm1274 = vcmp.ge.f32.partialorder %v1209, 0.0
    %vm1275 = vcmp.ge.f32.partialorder %v1211, 0.0
    %vm1276 = vcmp.ge.f32.partialorder %v1213, 0.0
    %vm1277 = vcmp.ge.f32.partialorder %v1217, 0.0
    %vm1278 = vcmp.ge.f32.partialorder %v1219, 0.0
    %vm1279 = vcmp.ge.f32.partialorder %v1221, 0.0
    %vm1280 = vcmp.ge.f32.partialorder %v1223, 0.0
    %vm1281 = vcmp.ge.f32.partialorder %v1227, 0.0
    %vm1282 = vcmp.ge.f32.partialorder %v1229, 0.0
    %vm1283 = vcmp.ge.f32.partialorder %v1231, 0.0
    %vm1284 = vcmp.ge.f32.partialorder %v1233, 0.0
    %vm1285 = vcmp.ge.f32.partialorder %v1237, 0.0
    %vm1286 = vcmp.ge.f32.partialorder %v1239, 0.0
    %vm1287 = vcmp.ge.f32.partialorder %v1241, 0.0
    %vm1288 = vcmp.ge.f32.partialorder %v1243, 0.0
    %vm1289 = vcmp.ge.f32.partialorder %v1247, 0.0
    %vm1290 = vcmp.ge.f32.partialorder %v1249, 0.0
    %vm1291 = vcmp.ge.f32.partialorder %v1251, 0.0
    %vm1292 = vcmp.ge.f32.partialorder %v1253, 0.0
    %vm1293 = vcmp.ge.f32.partialorder %v1257, 0.0
    %vm1294 = vcmp.ge.f32.partialorder %v1259, 0.0
    %vm1295 = vcmp.ge.f32.partialorder %v1261, 0.0
    %vm1296 = vcmp.ge.f32.partialorder %v1263, 0.0
    %v1297 = vmul.f32 %v1187, 0.01
    %v1298 = vmul.f32 %v1189, 0.01
    %v1299 = vmul.f32 %v1191, 0.01
    %v1300 = vmul.f32 %v1193, 0.01
    %v1301 = vmul.f32 %v1197, 0.01
    %v1302 = vmul.f32 %v1199, 0.01
    %v1303 = vmul.f32 %v1201, 0.01
    %v1304 = vmul.f32 %v1203, 0.01
    %v1305 = vmul.f32 %v1207, 0.01
    %v1306 = vmul.f32 %v1209, 0.01
    %v1307 = vmul.f32 %v1211, 0.01
    %v1308 = vmul.f32 %v1213, 0.01
    %v1309 = vmul.f32 %v1217, 0.01
    %v1310 = vmul.f32 %v1219, 0.01
    %v1311 = vmul.f32 %v1221, 0.01
    %v1312 = vmul.f32 %v1223, 0.01
    %v1313 = vmul.f32 %v1227, 0.01
    %v1314 = vmul.f32 %v1229, 0.01
    %v1315 = vmul.f32 %v1231, 0.01
    %v1316 = vmul.f32 %v1233, 0.01
    %v1317 = vmul.f32 %v1237, 0.01
    %v1318 = vmul.f32 %v1239, 0.01
    %v1319 = vmul.f32 %v1241, 0.01
    %v1320 = vmul.f32 %v1243, 0.01
    %v1321 = vmul.f32 %v1247, 0.01
    %v1322 = vmul.f32 %v1249, 0.01
    %v1323 = vmul.f32 %v1251, 0.01
    %v1324 = vmul.f32 %v1253, 0.01
    %v1325 = vmul.f32 %v1257, 0.01
    %v1326 = vmul.f32 %v1259, 0.01
    %v1327 = vmul.f32 %v1261, 0.01
    %v1328 = vmul.f32 %v1263, 0.01
    %v1329 = vsel %vm1265, %v1187, %v1297
    %v1330 = vsel %vm1266, %v1189, %v1298
    %v1331 = vsel %vm1267, %v1191, %v1299
    %v1332 = vsel %vm1268, %v1193, %v1300
    %v1333 = vsel %vm1269, %v1197, %v1301
    %v1334 = vsel %vm1270, %v1199, %v1302
    %v1335 = vsel %vm1271, %v1201, %v1303
    %v1336 = vsel %vm1272, %v1203, %v1304
    %v1337 = vsel %vm1273, %v1207, %v1305
    %v1338 = vsel %vm1274, %v1209, %v1306
    %v1339 = vsel %vm1275, %v1211, %v1307
    %v1340 = vsel %vm1276, %v1213, %v1308
    %v1341 = vsel %vm1277, %v1217, %v1309
    %v1342 = vsel %vm1278, %v1219, %v1310
    %v1343 = vsel %vm1279, %v1221, %v1311
    %v1344 = vsel %vm1280, %v1223, %v1312
    %v1345 = vsel %vm1281, %v1227, %v1313
    %v1346 = vsel %vm1282, %v1229, %v1314
    %v1347 = vsel %vm1283, %v1231, %v1315
    %v1348 = vsel %vm1284, %v1233, %v1316
    %v1349 = vsel %vm1285, %v1237, %v1317
    %v1350 = vsel %vm1286, %v1239, %v1318
    %v1351 = vsel %vm1287, %v1241, %v1319
    %v1352 = vsel %vm1288, %v1243, %v1320
    %v1353 = vsel %vm1289, %v1247, %v1321
    %v1354 = vsel %vm1290, %v1249, %v1322
    %v1355 = vsel %vm1291, %v1251, %v1323
    %v1356 = vsel %vm1292, %v1253, %v1324
    %v1357 = vsel %vm1293, %v1257, %v1325
    %v1358 = vsel %vm1294, %v1259, %v1326
    %v1359 = vsel %vm1295, %v1261, %v1327
    %v1360 = vsel %vm1296, %v1263, %v1328
    %v1361 = vld [vmem:[%s5] sm:$0x3]
    %v1363 = vlaneseq
    %v1364 = vshrl.u32 %v1363, 7
    %v1365 = vsub.s32 0, %v1364
    %v1366 = vrot.slane %v1361, %v1365
    %v1367 = vlaneseq
    %v1368 = vshrl.u32 %v1367, 7
    %v1369 = vsub.s32 1, %v1368
    %v1370 = vrot.slane %v1361, %v1369
    %v1373 = vmul.f32 %v1329, %v1366
    %v1374 = vmul.f32 %v1330, %v1370
    %v1375 = vmul.f32 %v1331, %v1366
    %v1376 = vmul.f32 %v1332, %v1370
    %v1377 = vmul.f32 %v1333, %v1366
    %v1378 = vmul.f32 %v1334, %v1370
    %v1379 = vmul.f32 %v1335, %v1366
    %v1380 = vmul.f32 %v1336, %v1370
    %v1381 = vmul.f32 %v1337, %v1366
    %v1382 = vmul.f32 %v1338, %v1370
    %v1383 = vmul.f32 %v1339, %v1366
    %v1384 = vmul.f32 %v1340, %v1370
    %v1385 = vmul.f32 %v1341, %v1366
    %v1386 = vmul.f32 %v1342, %v1370
    %v1387 = vmul.f32 %v1343, %v1366
    %v1388 = vmul.f32 %v1344, %v1370
    %v1389 = vmul.f32 %v1345, %v1366
    %v1390 = vmul.f32 %v1346, %v1370
    %v1391 = vmul.f32 %v1347, %v1366
    %v1392 = vmul.f32 %v1348, %v1370
    %v1393 = vmul.f32 %v1349, %v1366
    %v1394 = vmul.f32 %v1350, %v1370
    %v1395 = vmul.f32 %v1351, %v1366
    %v1396 = vmul.f32 %v1352, %v1370
    %v1397 = vmul.f32 %v1353, %v1366
    %v1398 = vmul.f32 %v1354, %v1370
    %v1399 = vmul.f32 %v1355, %v1366
    %v1400 = vmul.f32 %v1356, %v1370
    %v1401 = vmul.f32 %v1357, %v1366
    %v1402 = vmul.f32 %v1358, %v1370
    %v1403 = vmul.f32 %v1359, %v1366
    %v1404 = vmul.f32 %v1360, %v1370
    %v1405 = vadd.f32 %v1373, %v1374
    %1406 = vadd.xlane.f32.xlu0 %v1405
    %v1407 = vpop.xlane.xlu0 %1406
    %v1408 = vadd.f32 %v1375, %v1376
    %1409 = vadd.xlane.f32.xlu0 %v1408
    %v1410 = vpop.xlane.xlu0 %1409
    %v1411 = vadd.f32 %v1377, %v1378
    %1412 = vadd.xlane.f32.xlu0 %v1411
    %v1413 = vpop.xlane.xlu0 %1412
    %v1414 = vadd.f32 %v1379, %v1380
    %1415 = vadd.xlane.f32.xlu0 %v1414
    %v1416 = vpop.xlane.xlu0 %1415
    %v1417 = vadd.f32 %v1381, %v1382
    %1418 = vadd.xlane.f32.xlu0 %v1417
    %v1419 = vpop.xlane.xlu0 %1418
    %v1420 = vadd.f32 %v1383, %v1384
    %1421 = vadd.xlane.f32.xlu0 %v1420
    %v1422 = vpop.xlane.xlu0 %1421
    %v1423 = vadd.f32 %v1385, %v1386
    %1424 = vadd.xlane.f32.xlu0 %v1423
    %v1425 = vpop.xlane.xlu0 %1424
    %v1426 = vadd.f32 %v1387, %v1388
    %1427 = vadd.xlane.f32.xlu0 %v1426
    %v1428 = vpop.xlane.xlu0 %1427
    %v1429 = vadd.f32 %v1389, %v1390
    %1430 = vadd.xlane.f32.xlu0 %v1429
    %v1431 = vpop.xlane.xlu0 %1430
    %v1432 = vadd.f32 %v1391, %v1392
    %1433 = vadd.xlane.f32.xlu0 %v1432
    %v1434 = vpop.xlane.xlu0 %1433
    %v1435 = vadd.f32 %v1393, %v1394
    %1436 = vadd.xlane.f32.xlu0 %v1435
    %v1437 = vpop.xlane.xlu0 %1436
    %v1438 = vadd.f32 %v1395, %v1396
    %1439 = vadd.xlane.f32.xlu0 %v1438
    %v1440 = vpop.xlane.xlu0 %1439
    %v1441 = vadd.f32 %v1397, %v1398
    %1442 = vadd.xlane.f32.xlu0 %v1441
    %v1443 = vpop.xlane.xlu0 %1442
    %v1444 = vadd.f32 %v1399, %v1400
    %1445 = vadd.xlane.f32.xlu0 %v1444
    %v1446 = vpop.xlane.xlu0 %1445
    %v1447 = vadd.f32 %v1401, %v1402
    %1448 = vadd.xlane.f32.xlu0 %v1447
    %v1449 = vpop.xlane.xlu0 %1448
    %v1450 = vadd.f32 %v1403, %v1404
    %1451 = vadd.xlane.f32.xlu0 %v1450
    %v1452 = vpop.xlane.xlu0 %1451
    %v1453 = vld [vmem:[%s6] sm:$0x1]
    %v1455 = vlaneseq
    %v1456 = vshrl.u32 %v1455, 7
    %v1457 = vsub.s32 0, %v1456
    %v1458 = vrot.slane %v1453, %v1457
    %1460 = vbcast.lane.b32.xlu0 %v1458, 256
    %v1461 = vpop.permute.xlu0 %1460
    %s1463 = sor.u32 256, 8
    %1464 = vbcast.lane.b32.xlu0 %v1458, %s1463
    %v1465 = vpop.permute.xlu0 %1464
    %s1467 = sor.u32 256, 16
    %1468 = vbcast.lane.b32.xlu0 %v1458, %s1467
    %v1469 = vpop.permute.xlu0 %1468
    %s1471 = sor.u32 256, 24
    %1472 = vbcast.lane.b32.xlu0 %v1458, %s1471
    %v1473 = vpop.permute.xlu0 %1472
    %s1475 = sor.u32 256, 32
    %1476 = vbcast.lane.b32.xlu0 %v1458, %s1475
    %v1477 = vpop.permute.xlu0 %1476
    %s1479 = sor.u32 256, 40
    %1480 = vbcast.lane.b32.xlu0 %v1458, %s1479
    %v1481 = vpop.permute.xlu0 %1480
    %s1483 = sor.u32 256, 48
    %1484 = vbcast.lane.b32.xlu0 %v1458, %s1483
    %v1485 = vpop.permute.xlu0 %1484
    %s1487 = sor.u32 256, 56
    %1488 = vbcast.lane.b32.xlu0 %v1458, %s1487
    %v1489 = vpop.permute.xlu0 %1488
    %s1491 = sor.u32 256, 64
    %1492 = vbcast.lane.b32.xlu0 %v1458, %s1491
    %v1493 = vpop.permute.xlu0 %1492
    %s1495 = sor.u32 256, 72
    %1496 = vbcast.lane.b32.xlu0 %v1458, %s1495
    %v1497 = vpop.permute.xlu0 %1496
    %s1499 = sor.u32 256, 80
    %1500 = vbcast.lane.b32.xlu0 %v1458, %s1499
    %v1501 = vpop.permute.xlu0 %1500
    %s1503 = sor.u32 256, 88
    %1504 = vbcast.lane.b32.xlu0 %v1458, %s1503
    %v1505 = vpop.permute.xlu0 %1504
    %s1507 = sor.u32 256, 96
    %1508 = vbcast.lane.b32.xlu0 %v1458, %s1507
    %v1509 = vpop.permute.xlu0 %1508
    %s1511 = sor.u32 256, 104
    %1512 = vbcast.lane.b32.xlu0 %v1458, %s1511
    %v1513 = vpop.permute.xlu0 %1512
    %s1515 = sor.u32 256, 112
    %1516 = vbcast.lane.b32.xlu0 %v1458, %s1515
    %v1517 = vpop.permute.xlu0 %1516
    %s1519 = sor.u32 256, 120
    %1520 = vbcast.lane.b32.xlu0 %v1458, %s1519
    %v1521 = vpop.permute.xlu0 %1520
    %v1538 = vadd.f32 %v1407, %v1461
    %v1539 = vadd.f32 %v1410, %v1465
    %v1540 = vadd.f32 %v1413, %v1469
    %v1541 = vadd.f32 %v1416, %v1473
    %v1542 = vadd.f32 %v1419, %v1477
    %v1543 = vadd.f32 %v1422, %v1481
    %v1544 = vadd.f32 %v1425, %v1485
    %v1545 = vadd.f32 %v1428, %v1489
    %v1546 = vadd.f32 %v1431, %v1493
    %v1547 = vadd.f32 %v1434, %v1497
    %v1548 = vadd.f32 %v1437, %v1501
    %v1549 = vadd.f32 %v1440, %v1505
    %v1550 = vadd.f32 %v1443, %v1509
    %v1551 = vadd.f32 %v1446, %v1513
    %v1552 = vadd.f32 %v1449, %v1517
    %v1553 = vadd.f32 %v1452, %v1521
    %v1554 = vxor.u32 %v1538, 2147483648
    %v1555 = vxor.u32 %v1539, 2147483648
    %v1556 = vxor.u32 %v1540, 2147483648
    %v1557 = vxor.u32 %v1541, 2147483648
    %v1558 = vxor.u32 %v1542, 2147483648
    %v1559 = vxor.u32 %v1543, 2147483648
    %v1560 = vxor.u32 %v1544, 2147483648
    %v1561 = vxor.u32 %v1545, 2147483648
    %v1562 = vxor.u32 %v1546, 2147483648
    %v1563 = vxor.u32 %v1547, 2147483648
    %v1564 = vxor.u32 %v1548, 2147483648
    %v1565 = vxor.u32 %v1549, 2147483648
    %v1566 = vxor.u32 %v1550, 2147483648
    %v1567 = vxor.u32 %v1551, 2147483648
    %v1568 = vxor.u32 %v1552, 2147483648
    %v1569 = vxor.u32 %v1553, 2147483648
    %v1570 = vmul.f32 %v1554, 1.442695
    %v1571 = vpow.pop %v1570
    %v1572 = vmul.f32 %v1555, 1.442695
    %v1573 = vpow.pop %v1572
    %v1574 = vmul.f32 %v1556, 1.442695
    %v1575 = vpow.pop %v1574
    %v1576 = vmul.f32 %v1557, 1.442695
    %v1577 = vpow.pop %v1576
    %v1578 = vmul.f32 %v1558, 1.442695
    %v1579 = vpow.pop %v1578
    %v1580 = vmul.f32 %v1559, 1.442695
    %v1581 = vpow.pop %v1580
    %v1582 = vmul.f32 %v1560, 1.442695
    %v1583 = vpow.pop %v1582
    %v1584 = vmul.f32 %v1561, 1.442695
    %v1585 = vpow.pop %v1584
    %v1586 = vmul.f32 %v1562, 1.442695
    %v1587 = vpow.pop %v1586
    %v1588 = vmul.f32 %v1563, 1.442695
    %v1589 = vpow.pop %v1588
    %v1590 = vmul.f32 %v1564, 1.442695
    %v1591 = vpow.pop %v1590
    %v1592 = vmul.f32 %v1565, 1.442695
    %v1593 = vpow.pop %v1592
    %v1594 = vmul.f32 %v1566, 1.442695
    %v1595 = vpow.pop %v1594
    %v1596 = vmul.f32 %v1567, 1.442695
    %v1597 = vpow.pop %v1596
    %v1598 = vmul.f32 %v1568, 1.442695
    %v1599 = vpow.pop %v1598
    %v1600 = vmul.f32 %v1569, 1.442695
    %v1601 = vpow.pop %v1600
    %v1602 = vadd.f32 %v1571, 1.0
    %v1603 = vadd.f32 %v1573, 1.0
    %v1604 = vadd.f32 %v1575, 1.0
    %v1605 = vadd.f32 %v1577, 1.0
    %v1606 = vadd.f32 %v1579, 1.0
    %v1607 = vadd.f32 %v1581, 1.0
    %v1608 = vadd.f32 %v1583, 1.0
    %v1609 = vadd.f32 %v1585, 1.0
    %v1610 = vadd.f32 %v1587, 1.0
    %v1611 = vadd.f32 %v1589, 1.0
    %v1612 = vadd.f32 %v1591, 1.0
    %v1613 = vadd.f32 %v1593, 1.0
    %v1614 = vadd.f32 %v1595, 1.0
    %v1615 = vadd.f32 %v1597, 1.0
    %v1616 = vadd.f32 %v1599, 1.0
    %v1617 = vadd.f32 %v1601, 1.0
    %v1618 = vrcp.pop %v1602
    %v1619 = vmul.f32 1.0, %v1618
    %v1620 = vrcp.pop %v1603
    %v1621 = vmul.f32 1.0, %v1620
    %v1622 = vrcp.pop %v1604
    %v1623 = vmul.f32 1.0, %v1622
    %v1624 = vrcp.pop %v1605
    %v1625 = vmul.f32 1.0, %v1624
    %v1626 = vrcp.pop %v1606
    %v1627 = vmul.f32 1.0, %v1626
    %v1628 = vrcp.pop %v1607
    %v1629 = vmul.f32 1.0, %v1628
    %v1630 = vrcp.pop %v1608
    %v1631 = vmul.f32 1.0, %v1630
    %v1632 = vrcp.pop %v1609
    %v1633 = vmul.f32 1.0, %v1632
    %v1634 = vrcp.pop %v1610
    %v1635 = vmul.f32 1.0, %v1634
    %v1636 = vrcp.pop %v1611
    %v1637 = vmul.f32 1.0, %v1636
    %v1638 = vrcp.pop %v1612
    %v1639 = vmul.f32 1.0, %v1638
    %v1640 = vrcp.pop %v1613
    %v1641 = vmul.f32 1.0, %v1640
    %v1642 = vrcp.pop %v1614
    %v1643 = vmul.f32 1.0, %v1642
    %v1644 = vrcp.pop %v1615
    %v1645 = vmul.f32 1.0, %v1644
    %v1646 = vrcp.pop %v1616
    %v1647 = vmul.f32 1.0, %v1646
    %v1648 = vrcp.pop %v1617
    %v1649 = vmul.f32 1.0, %v1648
    %1666 = vset.pattern.permute.xlu0 0
    %1667 = vperm.xlu0 %1666, %v1619
    %v1668 = vpop.permute.xlu0 %1667
    %1669 = vset.pattern.permute.xlu0 0
    %1670 = vperm.xlu0 %1669, %v1621
    %v1671 = vpop.permute.xlu0 %1670
    %1672 = vset.pattern.permute.xlu0 0
    %1673 = vperm.xlu0 %1672, %v1623
    %v1674 = vpop.permute.xlu0 %1673
    %1675 = vset.pattern.permute.xlu0 0
    %1676 = vperm.xlu0 %1675, %v1625
    %v1677 = vpop.permute.xlu0 %1676
    %1678 = vset.pattern.permute.xlu0 0
    %1679 = vperm.xlu0 %1678, %v1627
    %v1680 = vpop.permute.xlu0 %1679
    %1681 = vset.pattern.permute.xlu0 0
    %1682 = vperm.xlu0 %1681, %v1629
    %v1683 = vpop.permute.xlu0 %1682
    %1684 = vset.pattern.permute.xlu0 0
    %1685 = vperm.xlu0 %1684, %v1631
    %v1686 = vpop.permute.xlu0 %1685
    %1687 = vset.pattern.permute.xlu0 0
    %1688 = vperm.xlu0 %1687, %v1633
    %v1689 = vpop.permute.xlu0 %1688
    %1690 = vset.pattern.permute.xlu0 0
    %1691 = vperm.xlu0 %1690, %v1635
    %v1692 = vpop.permute.xlu0 %1691
    %1693 = vset.pattern.permute.xlu0 0
    %1694 = vperm.xlu0 %1693, %v1637
    %v1695 = vpop.permute.xlu0 %1694
    %1696 = vset.pattern.permute.xlu0 0
    %1697 = vperm.xlu0 %1696, %v1639
    %v1698 = vpop.permute.xlu0 %1697
    %1699 = vset.pattern.permute.xlu0 0
    %1700 = vperm.xlu0 %1699, %v1641
    %v1701 = vpop.permute.xlu0 %1700
    %1702 = vset.pattern.permute.xlu0 0
    %1703 = vperm.xlu0 %1702, %v1643
    %v1704 = vpop.permute.xlu0 %1703
    %1705 = vset.pattern.permute.xlu0 0
    %1706 = vperm.xlu0 %1705, %v1645
    %v1707 = vpop.permute.xlu0 %1706
    %1708 = vset.pattern.permute.xlu0 0
    %1709 = vperm.xlu0 %1708, %v1647
    %v1710 = vpop.permute.xlu0 %1709
    %1711 = vset.pattern.permute.xlu0 0
    %1712 = vperm.xlu0 %1711, %v1649
    %v1713 = vpop.permute.xlu0 %1712
    %v1714 = vlaneseq
    %v1715 = vand.u32 %v1714, 127
    %v1716 = vlaneseq
    %v1717 = vshrl.u32 %v1716, 7
    %v1718 = vsub.s32 %v1715, %v1717
    %v1719 = vrot.slane %v1668, %v1718
    %v1720 = vadd.s32 %v1715, 4294967288
    %v1721 = vlaneseq
    %v1722 = vshrl.u32 %v1721, 7
    %v1723 = vsub.s32 %v1720, %v1722
    %v1724 = vrot.slane %v1671, %v1723
    %vm1725 = vcmask 130112
    %v1726 = vsel %vm1725, %v1724, %v1719
    %v1727 = vadd.s32 %v1715, 4294967280
    %v1728 = vlaneseq
    %v1729 = vshrl.u32 %v1728, 7
    %v1730 = vsub.s32 %v1727, %v1729
    %v1731 = vrot.slane %v1674, %v1730
    %vm1732 = vcmask 195712
    %v1733 = vsel %vm1732, %v1731, %v1726
    %v1734 = vadd.s32 %v1715, 4294967272
    %v1735 = vlaneseq
    %v1736 = vshrl.u32 %v1735, 7
    %v1737 = vsub.s32 %v1734, %v1736
    %v1738 = vrot.slane %v1677, %v1737
    %vm1739 = vcmask 261312
    %v1740 = vsel %vm1739, %v1738, %v1733
    %v1741 = vadd.s32 %v1715, 4294967264
    %v1742 = vlaneseq
    %v1743 = vshrl.u32 %v1742, 7
    %v1744 = vsub.s32 %v1741, %v1743
    %v1745 = vrot.slane %v1680, %v1744
    %vm1746 = vcmask 326912
    %v1747 = vsel %vm1746, %v1745, %v1740
    %v1748 = vadd.s32 %v1715, 4294967256
    %v1749 = vlaneseq
    %v1750 = vshrl.u32 %v1749, 7
    %v1751 = vsub.s32 %v1748, %v1750
    %v1752 = vrot.slane %v1683, %v1751
    %vm1753 = vcmask 392512
    %v1754 = vsel %vm1753, %v1752, %v1747
    %v1755 = vadd.s32 %v1715, 4294967248
    %v1756 = vlaneseq
    %v1757 = vshrl.u32 %v1756, 7
    %v1758 = vsub.s32 %v1755, %v1757
    %v1759 = vrot.slane %v1686, %v1758
    %vm1760 = vcmask 458112
    %v1761 = vsel %vm1760, %v1759, %v1754
    %v1762 = vadd.s32 %v1715, 4294967240
    %v1763 = vlaneseq
    %v1764 = vshrl.u32 %v1763, 7
    %v1765 = vsub.s32 %v1762, %v1764
    %v1766 = vrot.slane %v1689, %v1765
    %vm1767 = vcmask 523712
    %v1768 = vsel %vm1767, %v1766, %v1761
    %v1769 = vadd.s32 %v1715, 4294967232
    %v1770 = vlaneseq
    %v1771 = vshrl.u32 %v1770, 7
    %v1772 = vsub.s32 %v1769, %v1771
    %v1773 = vrot.slane %v1692, %v1772
    %vm1774 = vcmask 589312
    %v1775 = vsel %vm1774, %v1773, %v1768
    %v1776 = vadd.s32 %v1715, 4294967224
    %v1777 = vlaneseq
    %v1778 = vshrl.u32 %v1777, 7
    %v1779 = vsub.s32 %v1776, %v1778
    %v1780 = vrot.slane %v1695, %v1779
    %vm1781 = vcmask 654912
    %v1782 = vsel %vm1781, %v1780, %v1775
    %v1783 = vadd.s32 %v1715, 4294967216
    %v1784 = vlaneseq
    %v1785 = vshrl.u32 %v1784, 7
    %v1786 = vsub.s32 %v1783, %v1785
    %v1787 = vrot.slane %v1698, %v1786
    %vm1788 = vcmask 720512
    %v1789 = vsel %vm1788, %v1787, %v1782
    %v1790 = vadd.s32 %v1715, 4294967208
    %v1791 = vlaneseq
    %v1792 = vshrl.u32 %v1791, 7
    %v1793 = vsub.s32 %v1790, %v1792
    %v1794 = vrot.slane %v1701, %v1793
    %vm1795 = vcmask 786112
    %v1796 = vsel %vm1795, %v1794, %v1789
    %v1797 = vadd.s32 %v1715, 4294967200
    %v1798 = vlaneseq
    %v1799 = vshrl.u32 %v1798, 7
    %v1800 = vsub.s32 %v1797, %v1799
    %v1801 = vrot.slane %v1704, %v1800
    %vm1802 = vcmask 851712
    %v1803 = vsel %vm1802, %v1801, %v1796
    %v1804 = vadd.s32 %v1715, 4294967192
    %v1805 = vlaneseq
    %v1806 = vshrl.u32 %v1805, 7
    %v1807 = vsub.s32 %v1804, %v1806
    %v1808 = vrot.slane %v1707, %v1807
    %vm1809 = vcmask 917312
    %v1810 = vsel %vm1809, %v1808, %v1803
    %v1811 = vadd.s32 %v1715, 4294967184
    %v1812 = vlaneseq
    %v1813 = vshrl.u32 %v1812, 7
    %v1814 = vsub.s32 %v1811, %v1813
    %v1815 = vrot.slane %v1710, %v1814
    %vm1816 = vcmask 982912
    %v1817 = vsel %vm1816, %v1815, %v1810
    %v1818 = vadd.s32 %v1715, 4294967176
    %v1819 = vlaneseq
    %v1820 = vshrl.u32 %v1819, 7
    %v1821 = vsub.s32 %v1818, %v1820
    %v1822 = vrot.slane %v1713, %v1821
    %vm1823 = vcmask 1048512
    %v1824 = vsel %vm1823, %v1822, %v1817
    %1826 = vst [vmem:[#allocation5] sm:$0x1] %v1824
    // Predicated region
    $region34: #{tpu_custom_call.1} parent=1 // pred_check
      _
    $region35: #{tpu_custom_call.1} parent=1 // pred_check_branch
      %1828 = sbr.rel (0) target = $region37
    $region36: #{tpu_custom_call.1} parent=1 // pred_region
      %s1830 = ssub.s32 16, 16
      %1831 = vsyncadd [#allocation4], %s1830
      %s1833 = sshll.u32 [#allocation5], 4
      %s1834 = int_to_ptr.vmem [resolvable:$true] %s1833
      %1836 = dma.vmem_to_hbm [thread:$0]  %s1834, 16, %s7, [#allocation4]
    $region37: #{tpu_custom_call.1} parent=1 // pred_fallthru
      _
    // Predicated region
    $region38: #{tpu_custom_call.1} parent=1 // pred_check
      _
    $region39: #{tpu_custom_call.1} parent=1 // pred_check_branch
      %1838 = sbr.rel (0) target = $region41
    $region40: #{tpu_custom_call.1} parent=1 // pred_region
      %1839 = dma.done [#allocation4], 16
    $region41: #{tpu_custom_call.1} parent=1 // pred_fallthru
      _
    %1840 = vsyncpa [#allocation3], 1
    %1841 = vsyncpa [#allocation4], 1

</llo_original>
